<compile_context>
chip_gen: v5e
topology: v5e:2x2
jax: 0.10.0
libtpu: 0.0.40
codegen_flags: <defaults>
</compile_context>

<pallas_src>
import functools
import math

import jax
import jax.numpy as jnp
from jax.experimental import pallas as pl
from jax.experimental.pallas import tpu as pltpu


def _make_encoder_kernel(n_layers, seq_len, batch, hid_dim):
    """Builds the fused multi-layer LSTM kernel for static (L, T, B, H)."""
    T, B, H = seq_len, batch, hid_dim

    def kernel(*refs):
        nw = 3 * n_layers
        x_ref = refs[0]                       # (T*B, E) bf16
        w_refs = refs[1:1 + nw]               # per layer: w_ih (Din,4H) bf16,
        #                                       w_hh (H,4H) bf16, b (1,4H) f32
        h_out_ref = refs[1 + nw]              # (L, B, H) f32
        c_out_ref = refs[2 + nw]              # (L, B, H) f32
        gates_scr = refs[3 + nw]              # (T*B, 4H) f32 scratch
        seq_bufs = (refs[4 + nw], refs[5 + nw])   # 2x (T*B, H) f32 ping-pong

        cur = x_ref
        for l in range(n_layers):
            w_ih_ref = w_refs[3 * l]
            w_hh_ref = w_refs[3 * l + 1]
            b_ref = w_refs[3 * l + 2]

            # ---- Hoisted input projection for all timesteps (one MXU dot) ----
            x_all = cur[...].astype(jnp.bfloat16)              # (T*B, Din)
            gates_scr[...] = (
                jnp.dot(x_all, w_ih_ref[...],
                        preferred_element_type=jnp.float32)
                + b_ref[...])                                  # (T*B, 4H) f32

            w_hh = w_hh_ref[...]                               # (H, 4H) bf16
            out_buf = seq_bufs[l % 2]

            h = jnp.zeros((B, H), jnp.float32)
            c = jnp.zeros((B, H), jnp.float32)

            # ---- Sequential recurrence (statically unrolled, T is small) ----
            for t in range(T):
                g = (gates_scr[pl.ds(t * B, B), :]
                     + jnp.dot(h.astype(jnp.bfloat16), w_hh,
                               preferred_element_type=jnp.float32))  # (B, 4H)
                i_g = jax.nn.sigmoid(g[:, 0 * H:1 * H])
                f_g = jax.nn.sigmoid(g[:, 1 * H:2 * H])
                g_g = jnp.tanh(g[:, 2 * H:3 * H])
                o_g = jax.nn.sigmoid(g[:, 3 * H:4 * H])
                c = f_g * c + i_g * g_g
                h = o_g * jnp.tanh(c)
                out_buf[pl.ds(t * B, B), :] = h        # feeds next layer (VMEM only)

            # Final states written exactly once per layer.
            h_out_ref[l] = h
            c_out_ref[l] = c
            cur = out_buf

    return kernel


def init_encoder_params(key, src_vocab_size, emb_dim, hid_dim, n_layers):
    """Synthetic params mirroring nn.Embedding + nn.LSTM shapes.

    Weights are pre-transposed to (in_dim, 4H)/(H, 4H) and cast to bf16 for the
    MXU; biases are pre-folded (b_ih + b_hh) and kept f32.
    """
    k_emb, k_lstm = jax.random.split(key)
    emb_weight = jax.random.normal(k_emb, (src_vocab_size, emb_dim), jnp.float32)

    bound = 1.0 / math.sqrt(hid_dim)
    layers = []
    keys = jax.random.split(k_lstm, n_layers)
    for l in range(n_layers):
        din = emb_dim if l == 0 else hid_dim
        k1, k2, k3, k4 = jax.random.split(keys[l], 4)
        w_ih = jax.random.uniform(k1, (4 * hid_dim, din), jnp.float32, -bound, bound)
        w_hh = jax.random.uniform(k2, (4 * hid_dim, hid_dim), jnp.float32, -bound, bound)
        b_ih = jax.random.uniform(k3, (4 * hid_dim,), jnp.float32, -bound, bound)
        b_hh = jax.random.uniform(k4, (4 * hid_dim,), jnp.float32, -bound, bound)
        layers.append((w_ih.T.astype(jnp.bfloat16),          # (din, 4H)
                       w_hh.T.astype(jnp.bfloat16),          # (H, 4H)
                       (b_ih + b_hh)[None, :]))              # (1, 4H) f32
    return emb_weight, layers


@jax.jit
def encoder_forward(src, emb_weight, layers):
    """src: (T, B) int32 -> (hidden, cell), each (n_layers, B, hid_dim) f32."""
    T, B = src.shape
    n_layers = len(layers)
    H = layers[0][1].shape[0]          # w_hh_t is (H, 4H)
    E = emb_weight.shape[1]
    B_pad = max(8, ((B + 7) // 8) * 8)  # sublane-dense batch

    # Embedding gather (glue); pad batch, cast to bf16, flatten time into rows.
    embedded = jnp.take(emb_weight, src, axis=0)               # (T, B, E) f32
    if B_pad != B:
        embedded = jnp.pad(embedded, ((0, 0), (0, B_pad - B), (0, 0)))
    x = embedded.astype(jnp.bfloat16).reshape(T * B_pad, E)    # (T*B_pad, E)

    in_arrays = [x]
    for (w_ih_t, w_hh_t, b) in layers:
        in_arrays += [w_ih_t, w_hh_t, b]

    kernel = _make_encoder_kernel(n_layers, T, B_pad, H)
    vmem = pltpu.MemorySpace.VMEM

    h_out, c_out = pl.pallas_call(
        kernel,
        out_shape=(jax.ShapeDtypeStruct((n_layers, B_pad, H), jnp.float32),
                   jax.ShapeDtypeStruct((n_layers, B_pad, H), jnp.float32)),
        in_specs=[pl.BlockSpec(memory_space=vmem)] * len(in_arrays),
        out_specs=(pl.BlockSpec(memory_space=vmem),
                   pl.BlockSpec(memory_space=vmem)),
        scratch_shapes=[pltpu.VMEM((T * B_pad, 4 * H), jnp.float32),  # gates
                        pltpu.VMEM((T * B_pad, H), jnp.float32),      # seq ping
                        pltpu.VMEM((T * B_pad, H), jnp.float32)],     # seq pong
    )(*in_arrays)

    return h_out[:, :B, :], c_out[:, :B, :]


if __name__ == "__main__":
    # Small, forward-consistent shapes.
    SRC_VOCAB_SIZE = 50
    EMB_DIM = 32
    HID_DIM = 32
    N_LAYERS = 2
    SEQ_LEN = 8
    BATCH = 4

    key = jax.random.PRNGKey(0)
    k_params, k_src = jax.random.split(key)
    emb_weight, layers = init_encoder_params(
        k_params, SRC_VOCAB_SIZE, EMB_DIM, HID_DIM, N_LAYERS)

    src = jax.random.randint(k_src, (SEQ_LEN, BATCH), 0, SRC_VOCAB_SIZE, jnp.int32)

    hidden, cell = encoder_forward(src, emb_weight, layers)
    jax.block_until_ready((hidden, cell))

    assert hidden.shape == (N_LAYERS, BATCH, HID_DIM)
    assert cell.shape == (N_LAYERS, BATCH, HID_DIM)
    assert bool(jnp.all(jnp.isfinite(hidden))) and bool(jnp.all(jnp.isfinite(cell)))
    print("KERNEL_OK")
</pallas_src>

<mosaic_0001>
module attributes {stable_mosaic.version = 11 : i64} {
  func.func @kernel(%arg0: memref<64x32xbf16, #tpu.memory_space<vmem>>, %arg1: memref<32x128xbf16, #tpu.memory_space<vmem>>, %arg2: memref<32x128xbf16, #tpu.memory_space<vmem>>, %arg3: memref<1x128xf32, #tpu.memory_space<vmem>>, %arg4: memref<32x128xbf16, #tpu.memory_space<vmem>>, %arg5: memref<32x128xbf16, #tpu.memory_space<vmem>>, %arg6: memref<1x128xf32, #tpu.memory_space<vmem>>, %arg7: memref<2x8x32xf32, #tpu.memory_space<vmem>>, %arg8: memref<2x8x32xf32, #tpu.memory_space<vmem>>, %arg9: memref<64x128xf32, #tpu.memory_space<vmem>>, %arg10: memref<64x32xf32, #tpu.memory_space<vmem>>, %arg11: memref<64x32xf32, #tpu.memory_space<vmem>>) attributes {dimension_semantics = [], scalar_prefetch = 0 : i64, scratch_operands = 3 : i64, tpu.core_type = #tpu.core_type<tc>} {
    %c0 = arith.constant 0 : index
    %c0_0 = arith.constant 0 : index
    %0 = vector.load %arg0[%c0, %c0_0] : memref<64x32xbf16, #tpu.memory_space<vmem>>, vector<64x32xbf16>
    %c0_1 = arith.constant 0 : index
    %c0_2 = arith.constant 0 : index
    %1 = vector.load %arg1[%c0_1, %c0_2] : memref<32x128xbf16, #tpu.memory_space<vmem>>, vector<32x128xbf16>
    %cst = arith.constant dense<0.000000e+00> : vector<64x128xf32>
    %2 = tpu.matmul %0, %1, %cst {dimension_numbers = #tpu.dot_dimension_numbers<[1], [0], [0], [1], [0, 0, 1, 1], [], []>} : vector<64x32xbf16>, vector<32x128xbf16>, vector<64x128xf32> -> vector<64x128xf32>
    %c0_3 = arith.constant 0 : index
    %c0_4 = arith.constant 0 : index
    %3 = vector.load %arg3[%c0_3, %c0_4] : memref<1x128xf32, #tpu.memory_space<vmem>>, vector<1x128xf32>
    %4 = vector.broadcast %3 : vector<1x128xf32> to vector<64x128xf32>
    %5 = arith.addf %2, %4 : vector<64x128xf32>
    %c0_5 = arith.constant 0 : index
    %c0_6 = arith.constant 0 : index
    %6 = vector.load %arg9[%c0_5, %c0_6] : memref<64x128xf32, #tpu.memory_space<vmem>>, vector<64x128xf32>
    tpu.vector_store %arg9[%c0_5, %c0_6], %5 {strides = array<i32>} : memref<64x128xf32, #tpu.memory_space<vmem>>, vector<64x128xf32>,
    %c0_7 = arith.constant 0 : index
    %c0_8 = arith.constant 0 : index
    %7 = vector.load %arg2[%c0_7, %c0_8] : memref<32x128xbf16, #tpu.memory_space<vmem>>, vector<32x128xbf16>
    %cst_9 = arith.constant 0.000000e+00 : f32
    %8 = vector.broadcast %cst_9 : f32 to vector<8x32xf32>
    %cst_10 = arith.constant 0.000000e+00 : f32
    %9 = vector.broadcast %cst_10 : f32 to vector<8x32xf32>
    %c0_11 = arith.constant 0 : index
    %c0_12 = arith.constant 0 : index
    %10 = vector.load %arg9[%c0_11, %c0_12] : memref<64x128xf32, #tpu.memory_space<vmem>>, vector<8x128xf32>
    %11 = arith.truncf %8 : vector<8x32xf32> to vector<8x32xbf16>
    %cst_13 = arith.constant dense<0.000000e+00> : vector<8x128xf32>
    %12 = tpu.matmul %11, %7, %cst_13 {dimension_numbers = #tpu.dot_dimension_numbers<[1], [0], [0], [1], [0, 0, 1, 1], [], []>} : vector<8x32xbf16>, vector<32x128xbf16>, vector<8x128xf32> -> vector<8x128xf32>
    %13 = arith.addf %10, %12 : vector<8x128xf32>
    %14 = vector.extract_strided_slice %13 {offsets = [0, 0], sizes = [8, 32], strides = [1, 1]} : vector<8x128xf32> to vector<8x32xf32>
    %15 = arith.negf %14 : vector<8x32xf32>
    %16 = math.exp %15 : vector<8x32xf32>
    %cst_14 = arith.constant 1.000000e+00 : f32
    %17 = vector.broadcast %cst_14 : f32 to vector<8x32xf32>
    %18 = arith.addf %17, %16 : vector<8x32xf32>
    %19 = arith.divf %17, %18 : vector<8x32xf32>
    %20 = vector.extract_strided_slice %13 {offsets = [0, 32], sizes = [8, 32], strides = [1, 1]} : vector<8x128xf32> to vector<8x32xf32>
    %21 = arith.negf %20 : vector<8x32xf32>
    %22 = math.exp %21 : vector<8x32xf32>
    %cst_15 = arith.constant 1.000000e+00 : f32
    %23 = vector.broadcast %cst_15 : f32 to vector<8x32xf32>
    %24 = arith.addf %23, %22 : vector<8x32xf32>
    %25 = arith.divf %23, %24 : vector<8x32xf32>
    %26 = vector.extract_strided_slice %13 {offsets = [0, 64], sizes = [8, 32], strides = [1, 1]} : vector<8x128xf32> to vector<8x32xf32>
    %27 = math.tanh %26 : vector<8x32xf32>
    %28 = vector.extract_strided_slice %13 {offsets = [0, 96], sizes = [8, 32], strides = [1, 1]} : vector<8x128xf32> to vector<8x32xf32>
    %29 = arith.negf %28 : vector<8x32xf32>
    %30 = math.exp %29 : vector<8x32xf32>
    %cst_16 = arith.constant 1.000000e+00 : f32
    %31 = vector.broadcast %cst_16 : f32 to vector<8x32xf32>
    %32 = arith.addf %31, %30 : vector<8x32xf32>
    %33 = arith.divf %31, %32 : vector<8x32xf32>
    %34 = arith.mulf %25, %9 : vector<8x32xf32>
    %35 = arith.mulf %19, %27 : vector<8x32xf32>
    %36 = arith.addf %34, %35 : vector<8x32xf32>
    %37 = math.tanh %36 : vector<8x32xf32>
    %38 = arith.mulf %33, %37 : vector<8x32xf32>
    %c0_17 = arith.constant 0 : index
    %c0_18 = arith.constant 0 : index
    %39 = vector.load %arg10[%c0_17, %c0_18] : memref<64x32xf32, #tpu.memory_space<vmem>>, vector<8x32xf32>
    tpu.vector_store %arg10[%c0_17, %c0_18], %38 {strides = array<i32>} : memref<64x32xf32, #tpu.memory_space<vmem>>, vector<8x32xf32>,
    %c8 = arith.constant 8 : index
    %c0_19 = arith.constant 0 : index
    %40 = vector.load %arg9[%c8, %c0_19] : memref<64x128xf32, #tpu.memory_space<vmem>>, vector<8x128xf32>
    %41 = arith.truncf %38 : vector<8x32xf32> to vector<8x32xbf16>
    %cst_20 = arith.constant dense<0.000000e+00> : vector<8x128xf32>
    %42 = tpu.matmul %41, %7, %cst_20 {dimension_numbers = #tpu.dot_dimension_numbers<[1], [0], [0], [1], [0, 0, 1, 1], [], []>} : vector<8x32xbf16>, vector<32x128xbf16>, vector<8x128xf32> -> vector<8x128xf32>
    %43 = arith.addf %40, %42 : vector<8x128xf32>
    %44 = vector.extract_strided_slice %43 {offsets = [0, 0], sizes = [8, 32], strides = [1, 1]} : vector<8x128xf32> to vector<8x32xf32>
    %45 = arith.negf %44 : vector<8x32xf32>
    %46 = math.exp %45 : vector<8x32xf32>
    %cst_21 = arith.constant 1.000000e+00 : f32
    %47 = vector.broadcast %cst_21 : f32 to vector<8x32xf32>
    %48 = arith.addf %47, %46 : vector<8x32xf32>
    %49 = arith.divf %47, %48 : vector<8x32xf32>
    %50 = vector.extract_strided_slice %43 {offsets = [0, 32], sizes = [8, 32], strides = [1, 1]} : vector<8x128xf32> to vector<8x32xf32>
    %51 = arith.negf %50 : vector<8x32xf32>
    %52 = math.exp %51 : vector<8x32xf32>
    %cst_22 = arith.constant 1.000000e+00 : f32
    %53 = vector.broadcast %cst_22 : f32 to vector<8x32xf32>
    %54 = arith.addf %53, %52 : vector<8x32xf32>
    %55 = arith.divf %53, %54 : vector<8x32xf32>
    %56 = vector.extract_strided_slice %43 {offsets = [0, 64], sizes = [8, 32], strides = [1, 1]} : vector<8x128xf32> to vector<8x32xf32>
    %57 = math.tanh %56 : vector<8x32xf32>
    %58 = vector.extract_strided_slice %43 {offsets = [0, 96], sizes = [8, 32], strides = [1, 1]} : vector<8x128xf32> to vector<8x32xf32>
    %59 = arith.negf %58 : vector<8x32xf32>
    %60 = math.exp %59 : vector<8x32xf32>
    %cst_23 = arith.constant 1.000000e+00 : f32
    %61 = vector.broadcast %cst_23 : f32 to vector<8x32xf32>
    %62 = arith.addf %61, %60 : vector<8x32xf32>
    %63 = arith.divf %61, %62 : vector<8x32xf32>
    %64 = arith.mulf %55, %36 : vector<8x32xf32>
    %65 = arith.mulf %49, %57 : vector<8x32xf32>
    %66 = arith.addf %64, %65 : vector<8x32xf32>
    %67 = math.tanh %66 : vector<8x32xf32>
    %68 = arith.mulf %63, %67 : vector<8x32xf32>
    %c8_24 = arith.constant 8 : index
    %c0_25 = arith.constant 0 : index
    %69 = vector.load %arg10[%c8_24, %c0_25] : memref<64x32xf32, #tpu.memory_space<vmem>>, vector<8x32xf32>
    tpu.vector_store %arg10[%c8_24, %c0_25], %68 {strides = array<i32>} : memref<64x32xf32, #tpu.memory_space<vmem>>, vector<8x32xf32>,
    %c16 = arith.constant 16 : index
    %c0_26 = arith.constant 0 : index
    %70 = vector.load %arg9[%c16, %c0_26] : memref<64x128xf32, #tpu.memory_space<vmem>>, vector<8x128xf32>
    %71 = arith.truncf %68 : vector<8x32xf32> to vector<8x32xbf16>
    %cst_27 = arith.constant dense<0.000000e+00> : vector<8x128xf32>
    %72 = tpu.matmul %71, %7, %cst_27 {dimension_numbers = #tpu.dot_dimension_numbers<[1], [0], [0], [1], [0, 0, 1, 1], [], []>} : vector<8x32xbf16>, vector<32x128xbf16>, vector<8x128xf32> -> vector<8x128xf32>
    %73 = arith.addf %70, %72 : vector<8x128xf32>
    %74 = vector.extract_strided_slice %73 {offsets = [0, 0], sizes = [8, 32], strides = [1, 1]} : vector<8x128xf32> to vector<8x32xf32>
    %75 = arith.negf %74 : vector<8x32xf32>
    %76 = math.exp %75 : vector<8x32xf32>
    %cst_28 = arith.constant 1.000000e+00 : f32
    %77 = vector.broadcast %cst_28 : f32 to vector<8x32xf32>
    %78 = arith.addf %77, %76 : vector<8x32xf32>
    %79 = arith.divf %77, %78 : vector<8x32xf32>
    %80 = vector.extract_strided_slice %73 {offsets = [0, 32], sizes = [8, 32], strides = [1, 1]} : vector<8x128xf32> to vector<8x32xf32>
    %81 = arith.negf %80 : vector<8x32xf32>
    %82 = math.exp %81 : vector<8x32xf32>
    %cst_29 = arith.constant 1.000000e+00 : f32
    %83 = vector.broadcast %cst_29 : f32 to vector<8x32xf32>
    %84 = arith.addf %83, %82 : vector<8x32xf32>
    %85 = arith.divf %83, %84 : vector<8x32xf32>
    %86 = vector.extract_strided_slice %73 {offsets = [0, 64], sizes = [8, 32], strides = [1, 1]} : vector<8x128xf32> to vector<8x32xf32>
    %87 = math.tanh %86 : vector<8x32xf32>
    %88 = vector.extract_strided_slice %73 {offsets = [0, 96], sizes = [8, 32], strides = [1, 1]} : vector<8x128xf32> to vector<8x32xf32>
    %89 = arith.negf %88 : vector<8x32xf32>
    %90 = math.exp %89 : vector<8x32xf32>
    %cst_30 = arith.constant 1.000000e+00 : f32
    %91 = vector.broadcast %cst_30 : f32 to vector<8x32xf32>
    %92 = arith.addf %91, %90 : vector<8x32xf32>
    %93 = arith.divf %91, %92 : vector<8x32xf32>
    %94 = arith.mulf %85, %66 : vector<8x32xf32>
    %95 = arith.mulf %79, %87 : vector<8x32xf32>
    %96 = arith.addf %94, %95 : vector<8x32xf32>
    %97 = math.tanh %96 : vector<8x32xf32>
    %98 = arith.mulf %93, %97 : vector<8x32xf32>
    %c16_31 = arith.constant 16 : index
    %c0_32 = arith.constant 0 : index
    %99 = vector.load %arg10[%c16_31, %c0_32] : memref<64x32xf32, #tpu.memory_space<vmem>>, vector<8x32xf32>
    tpu.vector_store %arg10[%c16_31, %c0_32], %98 {strides = array<i32>} : memref<64x32xf32, #tpu.memory_space<vmem>>, vector<8x32xf32>,
    %c24 = arith.constant 24 : index
    %c0_33 = arith.constant 0 : index
    %100 = vector.load %arg9[%c24, %c0_33] : memref<64x128xf32, #tpu.memory_space<vmem>>, vector<8x128xf32>
    %101 = arith.truncf %98 : vector<8x32xf32> to vector<8x32xbf16>
    %cst_34 = arith.constant dense<0.000000e+00> : vector<8x128xf32>
    %102 = tpu.matmul %101, %7, %cst_34 {dimension_numbers = #tpu.dot_dimension_numbers<[1], [0], [0], [1], [0, 0, 1, 1], [], []>} : vector<8x32xbf16>, vector<32x128xbf16>, vector<8x128xf32> -> vector<8x128xf32>
    %103 = arith.addf %100, %102 : vector<8x128xf32>
    %104 = vector.extract_strided_slice %103 {offsets = [0, 0], sizes = [8, 32], strides = [1, 1]} : vector<8x128xf32> to vector<8x32xf32>
    %105 = arith.negf %104 : vector<8x32xf32>
    %106 = math.exp %105 : vector<8x32xf32>
    %cst_35 = arith.constant 1.000000e+00 : f32
    %107 = vector.broadcast %cst_35 : f32 to vector<8x32xf32>
    %108 = arith.addf %107, %106 : vector<8x32xf32>
    %109 = arith.divf %107, %108 : vector<8x32xf32>
    %110 = vector.extract_strided_slice %103 {offsets = [0, 32], sizes = [8, 32], strides = [1, 1]} : vector<8x128xf32> to vector<8x32xf32>
    %111 = arith.negf %110 : vector<8x32xf32>
    %112 = math.exp %111 : vector<8x32xf32>
    %cst_36 = arith.constant 1.000000e+00 : f32
    %113 = vector.broadcast %cst_36 : f32 to vector<8x32xf32>
    %114 = arith.addf %113, %112 : vector<8x32xf32>
    %115 = arith.divf %113, %114 : vector<8x32xf32>
    %116 = vector.extract_strided_slice %103 {offsets = [0, 64], sizes = [8, 32], strides = [1, 1]} : vector<8x128xf32> to vector<8x32xf32>
    %117 = math.tanh %116 : vector<8x32xf32>
    %118 = vector.extract_strided_slice %103 {offsets = [0, 96], sizes = [8, 32], strides = [1, 1]} : vector<8x128xf32> to vector<8x32xf32>
    %119 = arith.negf %118 : vector<8x32xf32>
    %120 = math.exp %119 : vector<8x32xf32>
    %cst_37 = arith.constant 1.000000e+00 : f32
    %121 = vector.broadcast %cst_37 : f32 to vector<8x32xf32>
    %122 = arith.addf %121, %120 : vector<8x32xf32>
    %123 = arith.divf %121, %122 : vector<8x32xf32>
    %124 = arith.mulf %115, %96 : vector<8x32xf32>
    %125 = arith.mulf %109, %117 : vector<8x32xf32>
    %126 = arith.addf %124, %125 : vector<8x32xf32>
    %127 = math.tanh %126 : vector<8x32xf32>
    %128 = arith.mulf %123, %127 : vector<8x32xf32>
    %c24_38 = arith.constant 24 : index
    %c0_39 = arith.constant 0 : index
    %129 = vector.load %arg10[%c24_38, %c0_39] : memref<64x32xf32, #tpu.memory_space<vmem>>, vector<8x32xf32>
    tpu.vector_store %arg10[%c24_38, %c0_39], %128 {strides = array<i32>} : memref<64x32xf32, #tpu.memory_space<vmem>>, vector<8x32xf32>,
    %c32 = arith.constant 32 : index
    %c0_40 = arith.constant 0 : index
    %130 = vector.load %arg9[%c32, %c0_40] : memref<64x128xf32, #tpu.memory_space<vmem>>, vector<8x128xf32>
    %131 = arith.truncf %128 : vector<8x32xf32> to vector<8x32xbf16>
    %cst_41 = arith.constant dense<0.000000e+00> : vector<8x128xf32>
    %132 = tpu.matmul %131, %7, %cst_41 {dimension_numbers = #tpu.dot_dimension_numbers<[1], [0], [0], [1], [0, 0, 1, 1], [], []>} : vector<8x32xbf16>, vector<32x128xbf16>, vector<8x128xf32> -> vector<8x128xf32>
    %133 = arith.addf %130, %132 : vector<8x128xf32>
    %134 = vector.extract_strided_slice %133 {offsets = [0, 0], sizes = [8, 32], strides = [1, 1]} : vector<8x128xf32> to vector<8x32xf32>
    %135 = arith.negf %134 : vector<8x32xf32>
    %136 = math.exp %135 : vector<8x32xf32>
    %cst_42 = arith.constant 1.000000e+00 : f32
    %137 = vector.broadcast %cst_42 : f32 to vector<8x32xf32>
    %138 = arith.addf %137, %136 : vector<8x32xf32>
    %139 = arith.divf %137, %138 : vector<8x32xf32>
    %140 = vector.extract_strided_slice %133 {offsets = [0, 32], sizes = [8, 32], strides = [1, 1]} : vector<8x128xf32> to vector<8x32xf32>
    %141 = arith.negf %140 : vector<8x32xf32>
    %142 = math.exp %141 : vector<8x32xf32>
    %cst_43 = arith.constant 1.000000e+00 : f32
    %143 = vector.broadcast %cst_43 : f32 to vector<8x32xf32>
    %144 = arith.addf %143, %142 : vector<8x32xf32>
    %145 = arith.divf %143, %144 : vector<8x32xf32>
    %146 = vector.extract_strided_slice %133 {offsets = [0, 64], sizes = [8, 32], strides = [1, 1]} : vector<8x128xf32> to vector<8x32xf32>
    %147 = math.tanh %146 : vector<8x32xf32>
    %148 = vector.extract_strided_slice %133 {offsets = [0, 96], sizes = [8, 32], strides = [1, 1]} : vector<8x128xf32> to vector<8x32xf32>
    %149 = arith.negf %148 : vector<8x32xf32>
    %150 = math.exp %149 : vector<8x32xf32>
    %cst_44 = arith.constant 1.000000e+00 : f32
    %151 = vector.broadcast %cst_44 : f32 to vector<8x32xf32>
    %152 = arith.addf %151, %150 : vector<8x32xf32>
    %153 = arith.divf %151, %152 : vector<8x32xf32>
    %154 = arith.mulf %145, %126 : vector<8x32xf32>
    %155 = arith.mulf %139, %147 : vector<8x32xf32>
    %156 = arith.addf %154, %155 : vector<8x32xf32>
    %157 = math.tanh %156 : vector<8x32xf32>
    %158 = arith.mulf %153, %157 : vector<8x32xf32>
    %c32_45 = arith.constant 32 : index
    %c0_46 = arith.constant 0 : index
    %159 = vector.load %arg10[%c32_45, %c0_46] : memref<64x32xf32, #tpu.memory_space<vmem>>, vector<8x32xf32>
    tpu.vector_store %arg10[%c32_45, %c0_46], %158 {strides = array<i32>} : memref<64x32xf32, #tpu.memory_space<vmem>>, vector<8x32xf32>,
    %c40 = arith.constant 40 : index
    %c0_47 = arith.constant 0 : index
    %160 = vector.load %arg9[%c40, %c0_47] : memref<64x128xf32, #tpu.memory_space<vmem>>, vector<8x128xf32>
    %161 = arith.truncf %158 : vector<8x32xf32> to vector<8x32xbf16>
    %cst_48 = arith.constant dense<0.000000e+00> : vector<8x128xf32>
    %162 = tpu.matmul %161, %7, %cst_48 {dimension_numbers = #tpu.dot_dimension_numbers<[1], [0], [0], [1], [0, 0, 1, 1], [], []>} : vector<8x32xbf16>, vector<32x128xbf16>, vector<8x128xf32> -> vector<8x128xf32>
    %163 = arith.addf %160, %162 : vector<8x128xf32>
    %164 = vector.extract_strided_slice %163 {offsets = [0, 0], sizes = [8, 32], strides = [1, 1]} : vector<8x128xf32> to vector<8x32xf32>
    %165 = arith.negf %164 : vector<8x32xf32>
    %166 = math.exp %165 : vector<8x32xf32>
    %cst_49 = arith.constant 1.000000e+00 : f32
    %167 = vector.broadcast %cst_49 : f32 to vector<8x32xf32>
    %168 = arith.addf %167, %166 : vector<8x32xf32>
    %169 = arith.divf %167, %168 : vector<8x32xf32>
    %170 = vector.extract_strided_slice %163 {offsets = [0, 32], sizes = [8, 32], strides = [1, 1]} : vector<8x128xf32> to vector<8x32xf32>
    %171 = arith.negf %170 : vector<8x32xf32>
    %172 = math.exp %171 : vector<8x32xf32>
    %cst_50 = arith.constant 1.000000e+00 : f32
    %173 = vector.broadcast %cst_50 : f32 to vector<8x32xf32>
    %174 = arith.addf %173, %172 : vector<8x32xf32>
    %175 = arith.divf %173, %174 : vector<8x32xf32>
    %176 = vector.extract_strided_slice %163 {offsets = [0, 64], sizes = [8, 32], strides = [1, 1]} : vector<8x128xf32> to vector<8x32xf32>
    %177 = math.tanh %176 : vector<8x32xf32>
    %178 = vector.extract_strided_slice %163 {offsets = [0, 96], sizes = [8, 32], strides = [1, 1]} : vector<8x128xf32> to vector<8x32xf32>
    %179 = arith.negf %178 : vector<8x32xf32>
    %180 = math.exp %179 : vector<8x32xf32>
    %cst_51 = arith.constant 1.000000e+00 : f32
    %181 = vector.broadcast %cst_51 : f32 to vector<8x32xf32>
    %182 = arith.addf %181, %180 : vector<8x32xf32>
    %183 = arith.divf %181, %182 : vector<8x32xf32>
    %184 = arith.mulf %175, %156 : vector<8x32xf32>
    %185 = arith.mulf %169, %177 : vector<8x32xf32>
    %186 = arith.addf %184, %185 : vector<8x32xf32>
    %187 = math.tanh %186 : vector<8x32xf32>
    %188 = arith.mulf %183, %187 : vector<8x32xf32>
    %c40_52 = arith.constant 40 : index
    %c0_53 = arith.constant 0 : index
    %189 = vector.load %arg10[%c40_52, %c0_53] : memref<64x32xf32, #tpu.memory_space<vmem>>, vector<8x32xf32>
    tpu.vector_store %arg10[%c40_52, %c0_53], %188 {strides = array<i32>} : memref<64x32xf32, #tpu.memory_space<vmem>>, vector<8x32xf32>,
    %c48 = arith.constant 48 : index
    %c0_54 = arith.constant 0 : index
    %190 = vector.load %arg9[%c48, %c0_54] : memref<64x128xf32, #tpu.memory_space<vmem>>, vector<8x128xf32>
    %191 = arith.truncf %188 : vector<8x32xf32> to vector<8x32xbf16>
    %cst_55 = arith.constant dense<0.000000e+00> : vector<8x128xf32>
    %192 = tpu.matmul %191, %7, %cst_55 {dimension_numbers = #tpu.dot_dimension_numbers<[1], [0], [0], [1], [0, 0, 1, 1], [], []>} : vector<8x32xbf16>, vector<32x128xbf16>, vector<8x128xf32> -> vector<8x128xf32>
    %193 = arith.addf %190, %192 : vector<8x128xf32>
    %194 = vector.extract_strided_slice %193 {offsets = [0, 0], sizes = [8, 32], strides = [1, 1]} : vector<8x128xf32> to vector<8x32xf32>
    %195 = arith.negf %194 : vector<8x32xf32>
    %196 = math.exp %195 : vector<8x32xf32>
    %cst_56 = arith.constant 1.000000e+00 : f32
    %197 = vector.broadcast %cst_56 : f32 to vector<8x32xf32>
    %198 = arith.addf %197, %196 : vector<8x32xf32>
    %199 = arith.divf %197, %198 : vector<8x32xf32>
    %200 = vector.extract_strided_slice %193 {offsets = [0, 32], sizes = [8, 32], strides = [1, 1]} : vector<8x128xf32> to vector<8x32xf32>
    %201 = arith.negf %200 : vector<8x32xf32>
    %202 = math.exp %201 : vector<8x32xf32>
    %cst_57 = arith.constant 1.000000e+00 : f32
    %203 = vector.broadcast %cst_57 : f32 to vector<8x32xf32>
    %204 = arith.addf %203, %202 : vector<8x32xf32>
    %205 = arith.divf %203, %204 : vector<8x32xf32>
    %206 = vector.extract_strided_slice %193 {offsets = [0, 64], sizes = [8, 32], strides = [1, 1]} : vector<8x128xf32> to vector<8x32xf32>
    %207 = math.tanh %206 : vector<8x32xf32>
    %208 = vector.extract_strided_slice %193 {offsets = [0, 96], sizes = [8, 32], strides = [1, 1]} : vector<8x128xf32> to vector<8x32xf32>
    %209 = arith.negf %208 : vector<8x32xf32>
    %210 = math.exp %209 : vector<8x32xf32>
    %cst_58 = arith.constant 1.000000e+00 : f32
    %211 = vector.broadcast %cst_58 : f32 to vector<8x32xf32>
    %212 = arith.addf %211, %210 : vector<8x32xf32>
    %213 = arith.divf %211, %212 : vector<8x32xf32>
    %214 = arith.mulf %205, %186 : vector<8x32xf32>
    %215 = arith.mulf %199, %207 : vector<8x32xf32>
    %216 = arith.addf %214, %215 : vector<8x32xf32>
    %217 = math.tanh %216 : vector<8x32xf32>
    %218 = arith.mulf %213, %217 : vector<8x32xf32>
    %c48_59 = arith.constant 48 : index
    %c0_60 = arith.constant 0 : index
    %219 = vector.load %arg10[%c48_59, %c0_60] : memref<64x32xf32, #tpu.memory_space<vmem>>, vector<8x32xf32>
    tpu.vector_store %arg10[%c48_59, %c0_60], %218 {strides = array<i32>} : memref<64x32xf32, #tpu.memory_space<vmem>>, vector<8x32xf32>,
    %c56 = arith.constant 56 : index
    %c0_61 = arith.constant 0 : index
    %220 = vector.load %arg9[%c56, %c0_61] : memref<64x128xf32, #tpu.memory_space<vmem>>, vector<8x128xf32>
    %221 = arith.truncf %218 : vector<8x32xf32> to vector<8x32xbf16>
    %cst_62 = arith.constant dense<0.000000e+00> : vector<8x128xf32>
    %222 = tpu.matmul %221, %7, %cst_62 {dimension_numbers = #tpu.dot_dimension_numbers<[1], [0], [0], [1], [0, 0, 1, 1], [], []>} : vector<8x32xbf16>, vector<32x128xbf16>, vector<8x128xf32> -> vector<8x128xf32>
    %223 = arith.addf %220, %222 : vector<8x128xf32>
    %224 = vector.extract_strided_slice %223 {offsets = [0, 0], sizes = [8, 32], strides = [1, 1]} : vector<8x128xf32> to vector<8x32xf32>
    %225 = arith.negf %224 : vector<8x32xf32>
    %226 = math.exp %225 : vector<8x32xf32>
    %cst_63 = arith.constant 1.000000e+00 : f32
    %227 = vector.broadcast %cst_63 : f32 to vector<8x32xf32>
    %228 = arith.addf %227, %226 : vector<8x32xf32>
    %229 = arith.divf %227, %228 : vector<8x32xf32>
    %230 = vector.extract_strided_slice %223 {offsets = [0, 32], sizes = [8, 32], strides = [1, 1]} : vector<8x128xf32> to vector<8x32xf32>
    %231 = arith.negf %230 : vector<8x32xf32>
    %232 = math.exp %231 : vector<8x32xf32>
    %cst_64 = arith.constant 1.000000e+00 : f32
    %233 = vector.broadcast %cst_64 : f32 to vector<8x32xf32>
    %234 = arith.addf %233, %232 : vector<8x32xf32>
    %235 = arith.divf %233, %234 : vector<8x32xf32>
    %236 = vector.extract_strided_slice %223 {offsets = [0, 64], sizes = [8, 32], strides = [1, 1]} : vector<8x128xf32> to vector<8x32xf32>
    %237 = math.tanh %236 : vector<8x32xf32>
    %238 = vector.extract_strided_slice %223 {offsets = [0, 96], sizes = [8, 32], strides = [1, 1]} : vector<8x128xf32> to vector<8x32xf32>
    %239 = arith.negf %238 : vector<8x32xf32>
    %240 = math.exp %239 : vector<8x32xf32>
    %cst_65 = arith.constant 1.000000e+00 : f32
    %241 = vector.broadcast %cst_65 : f32 to vector<8x32xf32>
    %242 = arith.addf %241, %240 : vector<8x32xf32>
    %243 = arith.divf %241, %242 : vector<8x32xf32>
    %244 = arith.mulf %235, %216 : vector<8x32xf32>
    %245 = arith.mulf %229, %237 : vector<8x32xf32>
    %246 = arith.addf %244, %245 : vector<8x32xf32>
    %247 = math.tanh %246 : vector<8x32xf32>
    %248 = arith.mulf %243, %247 : vector<8x32xf32>
    %c56_66 = arith.constant 56 : index
    %c0_67 = arith.constant 0 : index
    %249 = vector.load %arg10[%c56_66, %c0_67] : memref<64x32xf32, #tpu.memory_space<vmem>>, vector<8x32xf32>
    tpu.vector_store %arg10[%c56_66, %c0_67], %248 {strides = array<i32>} : memref<64x32xf32, #tpu.memory_space<vmem>>, vector<8x32xf32>,
    %c0_68 = arith.constant 0 : index
    %c0_69 = arith.constant 0 : index
    %c0_70 = arith.constant 0 : index
    %250 = vector.load %arg7[%c0_68, %c0_69, %c0_70] : memref<2x8x32xf32, #tpu.memory_space<vmem>>, vector<1x8x32xf32>
    %251 = vector.shape_cast %250 : vector<1x8x32xf32> to vector<8x32xf32>
    %252 = vector.shape_cast %248 : vector<8x32xf32> to vector<1x8x32xf32>
    tpu.vector_store %arg7[%c0_68, %c0_69, %c0_70], %252 {strides = array<i32>} : memref<2x8x32xf32, #tpu.memory_space<vmem>>, vector<1x8x32xf32>,
    %c0_71 = arith.constant 0 : index
    %c0_72 = arith.constant 0 : index
    %c0_73 = arith.constant 0 : index
    %253 = vector.load %arg8[%c0_71, %c0_72, %c0_73] : memref<2x8x32xf32, #tpu.memory_space<vmem>>, vector<1x8x32xf32>
    %254 = vector.shape_cast %253 : vector<1x8x32xf32> to vector<8x32xf32>
    %255 = vector.shape_cast %246 : vector<8x32xf32> to vector<1x8x32xf32>
    tpu.vector_store %arg8[%c0_71, %c0_72, %c0_73], %255 {strides = array<i32>} : memref<2x8x32xf32, #tpu.memory_space<vmem>>, vector<1x8x32xf32>,
    %c0_74 = arith.constant 0 : index
    %c0_75 = arith.constant 0 : index
    %256 = vector.load %arg10[%c0_74, %c0_75] : memref<64x32xf32, #tpu.memory_space<vmem>>, vector<64x32xf32>
    %257 = arith.truncf %256 : vector<64x32xf32> to vector<64x32xbf16>
    %c0_76 = arith.constant 0 : index
    %c0_77 = arith.constant 0 : index
    %258 = vector.load %arg4[%c0_76, %c0_77] : memref<32x128xbf16, #tpu.memory_space<vmem>>, vector<32x128xbf16>
    %cst_78 = arith.constant dense<0.000000e+00> : vector<64x128xf32>
    %259 = tpu.matmul %257, %258, %cst_78 {dimension_numbers = #tpu.dot_dimension_numbers<[1], [0], [0], [1], [0, 0, 1, 1], [], []>} : vector<64x32xbf16>, vector<32x128xbf16>, vector<64x128xf32> -> vector<64x128xf32>
    %c0_79 = arith.constant 0 : index
    %c0_80 = arith.constant 0 : index
    %260 = vector.load %arg6[%c0_79, %c0_80] : memref<1x128xf32, #tpu.memory_space<vmem>>, vector<1x128xf32>
    %261 = vector.broadcast %260 : vector<1x128xf32> to vector<64x128xf32>
    %262 = arith.addf %259, %261 : vector<64x128xf32>
    %c0_81 = arith.constant 0 : index
    %c0_82 = arith.constant 0 : index
    %263 = vector.load %arg9[%c0_81, %c0_82] : memref<64x128xf32, #tpu.memory_space<vmem>>, vector<64x128xf32>
    tpu.vector_store %arg9[%c0_81, %c0_82], %262 {strides = array<i32>} : memref<64x128xf32, #tpu.memory_space<vmem>>, vector<64x128xf32>,
    %c0_83 = arith.constant 0 : index
    %c0_84 = arith.constant 0 : index
    %264 = vector.load %arg5[%c0_83, %c0_84] : memref<32x128xbf16, #tpu.memory_space<vmem>>, vector<32x128xbf16>
    %cst_85 = arith.constant 0.000000e+00 : f32
    %265 = vector.broadcast %cst_85 : f32 to vector<8x32xf32>
    %cst_86 = arith.constant 0.000000e+00 : f32
    %266 = vector.broadcast %cst_86 : f32 to vector<8x32xf32>
    %c0_87 = arith.constant 0 : index
    %c0_88 = arith.constant 0 : index
    %267 = vector.load %arg9[%c0_87, %c0_88] : memref<64x128xf32, #tpu.memory_space<vmem>>, vector<8x128xf32>
    %268 = arith.truncf %265 : vector<8x32xf32> to vector<8x32xbf16>
    %cst_89 = arith.constant dense<0.000000e+00> : vector<8x128xf32>
    %269 = tpu.matmul %268, %264, %cst_89 {dimension_numbers = #tpu.dot_dimension_numbers<[1], [0], [0], [1], [0, 0, 1, 1], [], []>} : vector<8x32xbf16>, vector<32x128xbf16>, vector<8x128xf32> -> vector<8x128xf32>
    %270 = arith.addf %267, %269 : vector<8x128xf32>
    %271 = vector.extract_strided_slice %270 {offsets = [0, 0], sizes = [8, 32], strides = [1, 1]} : vector<8x128xf32> to vector<8x32xf32>
    %272 = arith.negf %271 : vector<8x32xf32>
    %273 = math.exp %272 : vector<8x32xf32>
    %cst_90 = arith.constant 1.000000e+00 : f32
    %274 = vector.broadcast %cst_90 : f32 to vector<8x32xf32>
    %275 = arith.addf %274, %273 : vector<8x32xf32>
    %276 = arith.divf %274, %275 : vector<8x32xf32>
    %277 = vector.extract_strided_slice %270 {offsets = [0, 32], sizes = [8, 32], strides = [1, 1]} : vector<8x128xf32> to vector<8x32xf32>
    %278 = arith.negf %277 : vector<8x32xf32>
    %279 = math.exp %278 : vector<8x32xf32>
    %cst_91 = arith.constant 1.000000e+00 : f32
    %280 = vector.broadcast %cst_91 : f32 to vector<8x32xf32>
    %281 = arith.addf %280, %279 : vector<8x32xf32>
    %282 = arith.divf %280, %281 : vector<8x32xf32>
    %283 = vector.extract_strided_slice %270 {offsets = [0, 64], sizes = [8, 32], strides = [1, 1]} : vector<8x128xf32> to vector<8x32xf32>
    %284 = math.tanh %283 : vector<8x32xf32>
    %285 = vector.extract_strided_slice %270 {offsets = [0, 96], sizes = [8, 32], strides = [1, 1]} : vector<8x128xf32> to vector<8x32xf32>
    %286 = arith.negf %285 : vector<8x32xf32>
    %287 = math.exp %286 : vector<8x32xf32>
    %cst_92 = arith.constant 1.000000e+00 : f32
    %288 = vector.broadcast %cst_92 : f32 to vector<8x32xf32>
    %289 = arith.addf %288, %287 : vector<8x32xf32>
    %290 = arith.divf %288, %289 : vector<8x32xf32>
    %291 = arith.mulf %282, %266 : vector<8x32xf32>
    %292 = arith.mulf %276, %284 : vector<8x32xf32>
    %293 = arith.addf %291, %292 : vector<8x32xf32>
    %294 = math.tanh %293 : vector<8x32xf32>
    %295 = arith.mulf %290, %294 : vector<8x32xf32>
    %c0_93 = arith.constant 0 : index
    %c0_94 = arith.constant 0 : index
    %296 = vector.load %arg11[%c0_93, %c0_94] : memref<64x32xf32, #tpu.memory_space<vmem>>, vector<8x32xf32>
    tpu.vector_store %arg11[%c0_93, %c0_94], %295 {strides = array<i32>} : memref<64x32xf32, #tpu.memory_space<vmem>>, vector<8x32xf32>,
    %c8_95 = arith.constant 8 : index
    %c0_96 = arith.constant 0 : index
    %297 = vector.load %arg9[%c8_95, %c0_96] : memref<64x128xf32, #tpu.memory_space<vmem>>, vector<8x128xf32>
    %298 = arith.truncf %295 : vector<8x32xf32> to vector<8x32xbf16>
    %cst_97 = arith.constant dense<0.000000e+00> : vector<8x128xf32>
    %299 = tpu.matmul %298, %264, %cst_97 {dimension_numbers = #tpu.dot_dimension_numbers<[1], [0], [0], [1], [0, 0, 1, 1], [], []>} : vector<8x32xbf16>, vector<32x128xbf16>, vector<8x128xf32> -> vector<8x128xf32>
    %300 = arith.addf %297, %299 : vector<8x128xf32>
    %301 = vector.extract_strided_slice %300 {offsets = [0, 0], sizes = [8, 32], strides = [1, 1]} : vector<8x128xf32> to vector<8x32xf32>
    %302 = arith.negf %301 : vector<8x32xf32>
    %303 = math.exp %302 : vector<8x32xf32>
    %cst_98 = arith.constant 1.000000e+00 : f32
    %304 = vector.broadcast %cst_98 : f32 to vector<8x32xf32>
    %305 = arith.addf %304, %303 : vector<8x32xf32>
    %306 = arith.divf %304, %305 : vector<8x32xf32>
    %307 = vector.extract_strided_slice %300 {offsets = [0, 32], sizes = [8, 32], strides = [1, 1]} : vector<8x128xf32> to vector<8x32xf32>
    %308 = arith.negf %307 : vector<8x32xf32>
    %309 = math.exp %308 : vector<8x32xf32>
    %cst_99 = arith.constant 1.000000e+00 : f32
    %310 = vector.broadcast %cst_99 : f32 to vector<8x32xf32>
    %311 = arith.addf %310, %309 : vector<8x32xf32>
    %312 = arith.divf %310, %311 : vector<8x32xf32>
    %313 = vector.extract_strided_slice %300 {offsets = [0, 64], sizes = [8, 32], strides = [1, 1]} : vector<8x128xf32> to vector<8x32xf32>
    %314 = math.tanh %313 : vector<8x32xf32>
    %315 = vector.extract_strided_slice %300 {offsets = [0, 96], sizes = [8, 32], strides = [1, 1]} : vector<8x128xf32> to vector<8x32xf32>
    %316 = arith.negf %315 : vector<8x32xf32>
    %317 = math.exp %316 : vector<8x32xf32>
    %cst_100 = arith.constant 1.000000e+00 : f32
    %318 = vector.broadcast %cst_100 : f32 to vector<8x32xf32>
    %319 = arith.addf %318, %317 : vector<8x32xf32>
    %320 = arith.divf %318, %319 : vector<8x32xf32>
    %321 = arith.mulf %312, %293 : vector<8x32xf32>
    %322 = arith.mulf %306, %314 : vector<8x32xf32>
    %323 = arith.addf %321, %322 : vector<8x32xf32>
    %324 = math.tanh %323 : vector<8x32xf32>
    %325 = arith.mulf %320, %324 : vector<8x32xf32>
    %c8_101 = arith.constant 8 : index
    %c0_102 = arith.constant 0 : index
    %326 = vector.load %arg11[%c8_101, %c0_102] : memref<64x32xf32, #tpu.memory_space<vmem>>, vector<8x32xf32>
    tpu.vector_store %arg11[%c8_101, %c0_102], %325 {strides = array<i32>} : memref<64x32xf32, #tpu.memory_space<vmem>>, vector<8x32xf32>,
    %c16_103 = arith.constant 16 : index
    %c0_104 = arith.constant 0 : index
    %327 = vector.load %arg9[%c16_103, %c0_104] : memref<64x128xf32, #tpu.memory_space<vmem>>, vector<8x128xf32>
    %328 = arith.truncf %325 : vector<8x32xf32> to vector<8x32xbf16>
    %cst_105 = arith.constant dense<0.000000e+00> : vector<8x128xf32>
    %329 = tpu.matmul %328, %264, %cst_105 {dimension_numbers = #tpu.dot_dimension_numbers<[1], [0], [0], [1], [0, 0, 1, 1], [], []>} : vector<8x32xbf16>, vector<32x128xbf16>, vector<8x128xf32> -> vector<8x128xf32>
    %330 = arith.addf %327, %329 : vector<8x128xf32>
    %331 = vector.extract_strided_slice %330 {offsets = [0, 0], sizes = [8, 32], strides = [1, 1]} : vector<8x128xf32> to vector<8x32xf32>
    %332 = arith.negf %331 : vector<8x32xf32>
    %333 = math.exp %332 : vector<8x32xf32>
    %cst_106 = arith.constant 1.000000e+00 : f32
    %334 = vector.broadcast %cst_106 : f32 to vector<8x32xf32>
    %335 = arith.addf %334, %333 : vector<8x32xf32>
    %336 = arith.divf %334, %335 : vector<8x32xf32>
    %337 = vector.extract_strided_slice %330 {offsets = [0, 32], sizes = [8, 32], strides = [1, 1]} : vector<8x128xf32> to vector<8x32xf32>
    %338 = arith.negf %337 : vector<8x32xf32>
    %339 = math.exp %338 : vector<8x32xf32>
    %cst_107 = arith.constant 1.000000e+00 : f32
    %340 = vector.broadcast %cst_107 : f32 to vector<8x32xf32>
    %341 = arith.addf %340, %339 : vector<8x32xf32>
    %342 = arith.divf %340, %341 : vector<8x32xf32>
    %343 = vector.extract_strided_slice %330 {offsets = [0, 64], sizes = [8, 32], strides = [1, 1]} : vector<8x128xf32> to vector<8x32xf32>
    %344 = math.tanh %343 : vector<8x32xf32>
    %345 = vector.extract_strided_slice %330 {offsets = [0, 96], sizes = [8, 32], strides = [1, 1]} : vector<8x128xf32> to vector<8x32xf32>
    %346 = arith.negf %345 : vector<8x32xf32>
    %347 = math.exp %346 : vector<8x32xf32>
    %cst_108 = arith.constant 1.000000e+00 : f32
    %348 = vector.broadcast %cst_108 : f32 to vector<8x32xf32>
    %349 = arith.addf %348, %347 : vector<8x32xf32>
    %350 = arith.divf %348, %349 : vector<8x32xf32>
    %351 = arith.mulf %342, %323 : vector<8x32xf32>
    %352 = arith.mulf %336, %344 : vector<8x32xf32>
    %353 = arith.addf %351, %352 : vector<8x32xf32>
    %354 = math.tanh %353 : vector<8x32xf32>
    %355 = arith.mulf %350, %354 : vector<8x32xf32>
    %c16_109 = arith.constant 16 : index
    %c0_110 = arith.constant 0 : index
    %356 = vector.load %arg11[%c16_109, %c0_110] : memref<64x32xf32, #tpu.memory_space<vmem>>, vector<8x32xf32>
    tpu.vector_store %arg11[%c16_109, %c0_110], %355 {strides = array<i32>} : memref<64x32xf32, #tpu.memory_space<vmem>>, vector<8x32xf32>,
    %c24_111 = arith.constant 24 : index
    %c0_112 = arith.constant 0 : index
    %357 = vector.load %arg9[%c24_111, %c0_112] : memref<64x128xf32, #tpu.memory_space<vmem>>, vector<8x128xf32>
    %358 = arith.truncf %355 : vector<8x32xf32> to vector<8x32xbf16>
    %cst_113 = arith.constant dense<0.000000e+00> : vector<8x128xf32>
    %359 = tpu.matmul %358, %264, %cst_113 {dimension_numbers = #tpu.dot_dimension_numbers<[1], [0], [0], [1], [0, 0, 1, 1], [], []>} : vector<8x32xbf16>, vector<32x128xbf16>, vector<8x128xf32> -> vector<8x128xf32>
    %360 = arith.addf %357, %359 : vector<8x128xf32>
    %361 = vector.extract_strided_slice %360 {offsets = [0, 0], sizes = [8, 32], strides = [1, 1]} : vector<8x128xf32> to vector<8x32xf32>
    %362 = arith.negf %361 : vector<8x32xf32>
    %363 = math.exp %362 : vector<8x32xf32>
    %cst_114 = arith.constant 1.000000e+00 : f32
    %364 = vector.broadcast %cst_114 : f32 to vector<8x32xf32>
    %365 = arith.addf %364, %363 : vector<8x32xf32>
    %366 = arith.divf %364, %365 : vector<8x32xf32>
    %367 = vector.extract_strided_slice %360 {offsets = [0, 32], sizes = [8, 32], strides = [1, 1]} : vector<8x128xf32> to vector<8x32xf32>
    %368 = arith.negf %367 : vector<8x32xf32>
    %369 = math.exp %368 : vector<8x32xf32>
    %cst_115 = arith.constant 1.000000e+00 : f32
    %370 = vector.broadcast %cst_115 : f32 to vector<8x32xf32>
    %371 = arith.addf %370, %369 : vector<8x32xf32>
    %372 = arith.divf %370, %371 : vector<8x32xf32>
    %373 = vector.extract_strided_slice %360 {offsets = [0, 64], sizes = [8, 32], strides = [1, 1]} : vector<8x128xf32> to vector<8x32xf32>
    %374 = math.tanh %373 : vector<8x32xf32>
    %375 = vector.extract_strided_slice %360 {offsets = [0, 96], sizes = [8, 32], strides = [1, 1]} : vector<8x128xf32> to vector<8x32xf32>
    %376 = arith.negf %375 : vector<8x32xf32>
    %377 = math.exp %376 : vector<8x32xf32>
    %cst_116 = arith.constant 1.000000e+00 : f32
    %378 = vector.broadcast %cst_116 : f32 to vector<8x32xf32>
    %379 = arith.addf %378, %377 : vector<8x32xf32>
    %380 = arith.divf %378, %379 : vector<8x32xf32>
    %381 = arith.mulf %372, %353 : vector<8x32xf32>
    %382 = arith.mulf %366, %374 : vector<8x32xf32>
    %383 = arith.addf %381, %382 : vector<8x32xf32>
    %384 = math.tanh %383 : vector<8x32xf32>
    %385 = arith.mulf %380, %384 : vector<8x32xf32>
    %c24_117 = arith.constant 24 : index
    %c0_118 = arith.constant 0 : index
    %386 = vector.load %arg11[%c24_117, %c0_118] : memref<64x32xf32, #tpu.memory_space<vmem>>, vector<8x32xf32>
    tpu.vector_store %arg11[%c24_117, %c0_118], %385 {strides = array<i32>} : memref<64x32xf32, #tpu.memory_space<vmem>>, vector<8x32xf32>,
    %c32_119 = arith.constant 32 : index
    %c0_120 = arith.constant 0 : index
    %387 = vector.load %arg9[%c32_119, %c0_120] : memref<64x128xf32, #tpu.memory_space<vmem>>, vector<8x128xf32>
    %388 = arith.truncf %385 : vector<8x32xf32> to vector<8x32xbf16>
    %cst_121 = arith.constant dense<0.000000e+00> : vector<8x128xf32>
    %389 = tpu.matmul %388, %264, %cst_121 {dimension_numbers = #tpu.dot_dimension_numbers<[1], [0], [0], [1], [0, 0, 1, 1], [], []>} : vector<8x32xbf16>, vector<32x128xbf16>, vector<8x128xf32> -> vector<8x128xf32>
    %390 = arith.addf %387, %389 : vector<8x128xf32>
    %391 = vector.extract_strided_slice %390 {offsets = [0, 0], sizes = [8, 32], strides = [1, 1]} : vector<8x128xf32> to vector<8x32xf32>
    %392 = arith.negf %391 : vector<8x32xf32>
    %393 = math.exp %392 : vector<8x32xf32>
    %cst_122 = arith.constant 1.000000e+00 : f32
    %394 = vector.broadcast %cst_122 : f32 to vector<8x32xf32>
    %395 = arith.addf %394, %393 : vector<8x32xf32>
    %396 = arith.divf %394, %395 : vector<8x32xf32>
    %397 = vector.extract_strided_slice %390 {offsets = [0, 32], sizes = [8, 32], strides = [1, 1]} : vector<8x128xf32> to vector<8x32xf32>
    %398 = arith.negf %397 : vector<8x32xf32>
    %399 = math.exp %398 : vector<8x32xf32>
    %cst_123 = arith.constant 1.000000e+00 : f32
    %400 = vector.broadcast %cst_123 : f32 to vector<8x32xf32>
    %401 = arith.addf %400, %399 : vector<8x32xf32>
    %402 = arith.divf %400, %401 : vector<8x32xf32>
    %403 = vector.extract_strided_slice %390 {offsets = [0, 64], sizes = [8, 32], strides = [1, 1]} : vector<8x128xf32> to vector<8x32xf32>
    %404 = math.tanh %403 : vector<8x32xf32>
    %405 = vector.extract_strided_slice %390 {offsets = [0, 96], sizes = [8, 32], strides = [1, 1]} : vector<8x128xf32> to vector<8x32xf32>
    %406 = arith.negf %405 : vector<8x32xf32>
    %407 = math.exp %406 : vector<8x32xf32>
    %cst_124 = arith.constant 1.000000e+00 : f32
    %408 = vector.broadcast %cst_124 : f32 to vector<8x32xf32>
    %409 = arith.addf %408, %407 : vector<8x32xf32>
    %410 = arith.divf %408, %409 : vector<8x32xf32>
    %411 = arith.mulf %402, %383 : vector<8x32xf32>
    %412 = arith.mulf %396, %404 : vector<8x32xf32>
    %413 = arith.addf %411, %412 : vector<8x32xf32>
    %414 = math.tanh %413 : vector<8x32xf32>
    %415 = arith.mulf %410, %414 : vector<8x32xf32>
    %c32_125 = arith.constant 32 : index
    %c0_126 = arith.constant 0 : index
    %416 = vector.load %arg11[%c32_125, %c0_126] : memref<64x32xf32, #tpu.memory_space<vmem>>, vector<8x32xf32>
    tpu.vector_store %arg11[%c32_125, %c0_126], %415 {strides = array<i32>} : memref<64x32xf32, #tpu.memory_space<vmem>>, vector<8x32xf32>,
    %c40_127 = arith.constant 40 : index
    %c0_128 = arith.constant 0 : index
    %417 = vector.load %arg9[%c40_127, %c0_128] : memref<64x128xf32, #tpu.memory_space<vmem>>, vector<8x128xf32>
    %418 = arith.truncf %415 : vector<8x32xf32> to vector<8x32xbf16>
    %cst_129 = arith.constant dense<0.000000e+00> : vector<8x128xf32>
    %419 = tpu.matmul %418, %264, %cst_129 {dimension_numbers = #tpu.dot_dimension_numbers<[1], [0], [0], [1], [0, 0, 1, 1], [], []>} : vector<8x32xbf16>, vector<32x128xbf16>, vector<8x128xf32> -> vector<8x128xf32>
    %420 = arith.addf %417, %419 : vector<8x128xf32>
    %421 = vector.extract_strided_slice %420 {offsets = [0, 0], sizes = [8, 32], strides = [1, 1]} : vector<8x128xf32> to vector<8x32xf32>
    %422 = arith.negf %421 : vector<8x32xf32>
    %423 = math.exp %422 : vector<8x32xf32>
    %cst_130 = arith.constant 1.000000e+00 : f32
    %424 = vector.broadcast %cst_130 : f32 to vector<8x32xf32>
    %425 = arith.addf %424, %423 : vector<8x32xf32>
    %426 = arith.divf %424, %425 : vector<8x32xf32>
    %427 = vector.extract_strided_slice %420 {offsets = [0, 32], sizes = [8, 32], strides = [1, 1]} : vector<8x128xf32> to vector<8x32xf32>
    %428 = arith.negf %427 : vector<8x32xf32>
    %429 = math.exp %428 : vector<8x32xf32>
    %cst_131 = arith.constant 1.000000e+00 : f32
    %430 = vector.broadcast %cst_131 : f32 to vector<8x32xf32>
    %431 = arith.addf %430, %429 : vector<8x32xf32>
    %432 = arith.divf %430, %431 : vector<8x32xf32>
    %433 = vector.extract_strided_slice %420 {offsets = [0, 64], sizes = [8, 32], strides = [1, 1]} : vector<8x128xf32> to vector<8x32xf32>
    %434 = math.tanh %433 : vector<8x32xf32>
    %435 = vector.extract_strided_slice %420 {offsets = [0, 96], sizes = [8, 32], strides = [1, 1]} : vector<8x128xf32> to vector<8x32xf32>
    %436 = arith.negf %435 : vector<8x32xf32>
    %437 = math.exp %436 : vector<8x32xf32>
    %cst_132 = arith.constant 1.000000e+00 : f32
    %438 = vector.broadcast %cst_132 : f32 to vector<8x32xf32>
    %439 = arith.addf %438, %437 : vector<8x32xf32>
    %440 = arith.divf %438, %439 : vector<8x32xf32>
    %441 = arith.mulf %432, %413 : vector<8x32xf32>
    %442 = arith.mulf %426, %434 : vector<8x32xf32>
    %443 = arith.addf %441, %442 : vector<8x32xf32>
    %444 = math.tanh %443 : vector<8x32xf32>
    %445 = arith.mulf %440, %444 : vector<8x32xf32>
    %c40_133 = arith.constant 40 : index
    %c0_134 = arith.constant 0 : index
    %446 = vector.load %arg11[%c40_133, %c0_134] : memref<64x32xf32, #tpu.memory_space<vmem>>, vector<8x32xf32>
    tpu.vector_store %arg11[%c40_133, %c0_134], %445 {strides = array<i32>} : memref<64x32xf32, #tpu.memory_space<vmem>>, vector<8x32xf32>,
    %c48_135 = arith.constant 48 : index
    %c0_136 = arith.constant 0 : index
    %447 = vector.load %arg9[%c48_135, %c0_136] : memref<64x128xf32, #tpu.memory_space<vmem>>, vector<8x128xf32>
    %448 = arith.truncf %445 : vector<8x32xf32> to vector<8x32xbf16>
    %cst_137 = arith.constant dense<0.000000e+00> : vector<8x128xf32>
    %449 = tpu.matmul %448, %264, %cst_137 {dimension_numbers = #tpu.dot_dimension_numbers<[1], [0], [0], [1], [0, 0, 1, 1], [], []>} : vector<8x32xbf16>, vector<32x128xbf16>, vector<8x128xf32> -> vector<8x128xf32>
    %450 = arith.addf %447, %449 : vector<8x128xf32>
    %451 = vector.extract_strided_slice %450 {offsets = [0, 0], sizes = [8, 32], strides = [1, 1]} : vector<8x128xf32> to vector<8x32xf32>
    %452 = arith.negf %451 : vector<8x32xf32>
    %453 = math.exp %452 : vector<8x32xf32>
    %cst_138 = arith.constant 1.000000e+00 : f32
    %454 = vector.broadcast %cst_138 : f32 to vector<8x32xf32>
    %455 = arith.addf %454, %453 : vector<8x32xf32>
    %456 = arith.divf %454, %455 : vector<8x32xf32>
    %457 = vector.extract_strided_slice %450 {offsets = [0, 32], sizes = [8, 32], strides = [1, 1]} : vector<8x128xf32> to vector<8x32xf32>
    %458 = arith.negf %457 : vector<8x32xf32>
    %459 = math.exp %458 : vector<8x32xf32>
    %cst_139 = arith.constant 1.000000e+00 : f32
    %460 = vector.broadcast %cst_139 : f32 to vector<8x32xf32>
    %461 = arith.addf %460, %459 : vector<8x32xf32>
    %462 = arith.divf %460, %461 : vector<8x32xf32>
    %463 = vector.extract_strided_slice %450 {offsets = [0, 64], sizes = [8, 32], strides = [1, 1]} : vector<8x128xf32> to vector<8x32xf32>
    %464 = math.tanh %463 : vector<8x32xf32>
    %465 = vector.extract_strided_slice %450 {offsets = [0, 96], sizes = [8, 32], strides = [1, 1]} : vector<8x128xf32> to vector<8x32xf32>
    %466 = arith.negf %465 : vector<8x32xf32>
    %467 = math.exp %466 : vector<8x32xf32>
    %cst_140 = arith.constant 1.000000e+00 : f32
    %468 = vector.broadcast %cst_140 : f32 to vector<8x32xf32>
    %469 = arith.addf %468, %467 : vector<8x32xf32>
    %470 = arith.divf %468, %469 : vector<8x32xf32>
    %471 = arith.mulf %462, %443 : vector<8x32xf32>
    %472 = arith.mulf %456, %464 : vector<8x32xf32>
    %473 = arith.addf %471, %472 : vector<8x32xf32>
    %474 = math.tanh %473 : vector<8x32xf32>
    %475 = arith.mulf %470, %474 : vector<8x32xf32>
    %c48_141 = arith.constant 48 : index
    %c0_142 = arith.constant 0 : index
    %476 = vector.load %arg11[%c48_141, %c0_142] : memref<64x32xf32, #tpu.memory_space<vmem>>, vector<8x32xf32>
    tpu.vector_store %arg11[%c48_141, %c0_142], %475 {strides = array<i32>} : memref<64x32xf32, #tpu.memory_space<vmem>>, vector<8x32xf32>,
    %c56_143 = arith.constant 56 : index
    %c0_144 = arith.constant 0 : index
    %477 = vector.load %arg9[%c56_143, %c0_144] : memref<64x128xf32, #tpu.memory_space<vmem>>, vector<8x128xf32>
    %478 = arith.truncf %475 : vector<8x32xf32> to vector<8x32xbf16>
    %cst_145 = arith.constant dense<0.000000e+00> : vector<8x128xf32>
    %479 = tpu.matmul %478, %264, %cst_145 {dimension_numbers = #tpu.dot_dimension_numbers<[1], [0], [0], [1], [0, 0, 1, 1], [], []>} : vector<8x32xbf16>, vector<32x128xbf16>, vector<8x128xf32> -> vector<8x128xf32>
    %480 = arith.addf %477, %479 : vector<8x128xf32>
    %481 = vector.extract_strided_slice %480 {offsets = [0, 0], sizes = [8, 32], strides = [1, 1]} : vector<8x128xf32> to vector<8x32xf32>
    %482 = arith.negf %481 : vector<8x32xf32>
    %483 = math.exp %482 : vector<8x32xf32>
    %cst_146 = arith.constant 1.000000e+00 : f32
    %484 = vector.broadcast %cst_146 : f32 to vector<8x32xf32>
    %485 = arith.addf %484, %483 : vector<8x32xf32>
    %486 = arith.divf %484, %485 : vector<8x32xf32>
    %487 = vector.extract_strided_slice %480 {offsets = [0, 32], sizes = [8, 32], strides = [1, 1]} : vector<8x128xf32> to vector<8x32xf32>
    %488 = arith.negf %487 : vector<8x32xf32>
    %489 = math.exp %488 : vector<8x32xf32>
    %cst_147 = arith.constant 1.000000e+00 : f32
    %490 = vector.broadcast %cst_147 : f32 to vector<8x32xf32>
    %491 = arith.addf %490, %489 : vector<8x32xf32>
    %492 = arith.divf %490, %491 : vector<8x32xf32>
    %493 = vector.extract_strided_slice %480 {offsets = [0, 64], sizes = [8, 32], strides = [1, 1]} : vector<8x128xf32> to vector<8x32xf32>
    %494 = math.tanh %493 : vector<8x32xf32>
    %495 = vector.extract_strided_slice %480 {offsets = [0, 96], sizes = [8, 32], strides = [1, 1]} : vector<8x128xf32> to vector<8x32xf32>
    %496 = arith.negf %495 : vector<8x32xf32>
    %497 = math.exp %496 : vector<8x32xf32>
    %cst_148 = arith.constant 1.000000e+00 : f32
    %498 = vector.broadcast %cst_148 : f32 to vector<8x32xf32>
    %499 = arith.addf %498, %497 : vector<8x32xf32>
    %500 = arith.divf %498, %499 : vector<8x32xf32>
    %501 = arith.mulf %492, %473 : vector<8x32xf32>
    %502 = arith.mulf %486, %494 : vector<8x32xf32>
    %503 = arith.addf %501, %502 : vector<8x32xf32>
    %504 = math.tanh %503 : vector<8x32xf32>
    %505 = arith.mulf %500, %504 : vector<8x32xf32>
    %c56_149 = arith.constant 56 : index
    %c0_150 = arith.constant 0 : index
    %506 = vector.load %arg11[%c56_149, %c0_150] : memref<64x32xf32, #tpu.memory_space<vmem>>, vector<8x32xf32>
    tpu.vector_store %arg11[%c56_149, %c0_150], %505 {strides = array<i32>} : memref<64x32xf32, #tpu.memory_space<vmem>>, vector<8x32xf32>,
    %c1 = arith.constant 1 : index
    %c0_151 = arith.constant 0 : index
    %c0_152 = arith.constant 0 : index
    %507 = vector.load %arg7[%c1, %c0_151, %c0_152] : memref<2x8x32xf32, #tpu.memory_space<vmem>>, vector<1x8x32xf32>
    %508 = vector.shape_cast %507 : vector<1x8x32xf32> to vector<8x32xf32>
    %509 = vector.shape_cast %505 : vector<8x32xf32> to vector<1x8x32xf32>
    tpu.vector_store %arg7[%c1, %c0_151, %c0_152], %509 {strides = array<i32>} : memref<2x8x32xf32, #tpu.memory_space<vmem>>, vector<1x8x32xf32>,
    %c1_153 = arith.constant 1 : index
    %c0_154 = arith.constant 0 : index
    %c0_155 = arith.constant 0 : index
    %510 = vector.load %arg8[%c1_153, %c0_154, %c0_155] : memref<2x8x32xf32, #tpu.memory_space<vmem>>, vector<1x8x32xf32>
    %511 = vector.shape_cast %510 : vector<1x8x32xf32> to vector<8x32xf32>
    %512 = vector.shape_cast %503 : vector<8x32xf32> to vector<1x8x32xf32>
    tpu.vector_store %arg8[%c1_153, %c0_154, %c0_155], %512 {strides = array<i32>} : memref<2x8x32xf32, #tpu.memory_space<vmem>>, vector<1x8x32xf32>,
    return
  }
}

</mosaic_0001>

<llo_original>
// kernel: encoder_forward.1
$region0: #{encoder_forward.1}
  #allocation0 [shape = 'u32[]', space=smem, size = 0x4, offset = 0x4, fixed_abs, tag = 'smem constant byte address 0x4 - core index']
  #allocation1 [shape = 'u32[72,128]{1,0:T(1,128)}', space=vmem, size = 0x9000, scoped, tag = 'internal scratch']
  #allocation2 [shape = 'f32[64,128]{1,0:T(8,128)}', space=vmem, size = 0x8000, scoped, tag = 'scratch operand']
  #allocation3 [shape = 'f32[64,32]{1,0:T(8,128)}', space=vmem, size = 0x8000, scoped, tag = 'scratch operand']
  #allocation4 [shape = 'f32[64,32]{1,0:T(8,128)}', space=vmem, size = 0x8000, scoped, tag = 'scratch operand']
  %s0 = inlined_call_operand.vmem [shape: bf16[64,32], index: 0, kind: input, shape index: {}]
  %s1 = inlined_call_operand.vmem [shape: bf16[32,128], index: 1, kind: input, shape index: {}]
  %s2 = inlined_call_operand.vmem [shape: bf16[32,128], index: 2, kind: input, shape index: {}]
  %s3 = inlined_call_operand.vmem [shape: f32[1,128], index: 3, kind: input, shape index: {}]
  %s4 = inlined_call_operand.vmem [shape: bf16[32,128], index: 4, kind: input, shape index: {}]
  %s5 = inlined_call_operand.vmem [shape: bf16[32,128], index: 5, kind: input, shape index: {}]
  %s6 = inlined_call_operand.vmem [shape: f32[1,128], index: 6, kind: input, shape index: {}]
  %s7 = inlined_call_operand.vmem [shape: f32[2,8,32], index: 7, kind: output, shape index: {0}]
  %s8 = inlined_call_operand.vmem [shape: f32[2,8,32], index: 8, kind: output, shape index: {1}]
  %9 = xla_tuple %s7, %s8
  %s10 = sld [smem:[#allocation0]]
  $region46: #{encoder_forward.1} parent=0
    _
  %s12 = ssub.s32 1, %s10
  %s13 = scalar_select 0, %s12, %s10
  // Predicated region
  $region2: #{encoder_forward.1} parent=0 // pred_check
    _
  $region3: #{encoder_forward.1} parent=0 // pred_check_branch
    %15 = sbr.rel (0) target = $region5
  $region4: #{encoder_forward.1} parent=0 // pred_region
    _
  $region5: #{encoder_forward.1} parent=0 // pred_fallthru
    _
  // Predicated region
  $region6: #{encoder_forward.1} parent=0 // pred_check
    _
  $region7: #{encoder_forward.1} parent=0 // pred_check_branch
    %17 = sbr.rel (0) target = $region9
  $region8: #{encoder_forward.1} parent=0 // pred_region
    _
  $region9: #{encoder_forward.1} parent=0 // pred_fallthru
    _
  // Predicated region
  $region10: #{encoder_forward.1} parent=0 // pred_check
    _
  $region11: #{encoder_forward.1} parent=0 // pred_check_branch
    %19 = sbr.rel (0) target = $region13
  $region12: #{encoder_forward.1} parent=0 // pred_region
    _
  $region13: #{encoder_forward.1} parent=0 // pred_fallthru
    _
  // Predicated region
  $region14: #{encoder_forward.1} parent=0 // pred_check
    _
  $region15: #{encoder_forward.1} parent=0 // pred_check_branch
    %21 = sbr.rel (0) target = $region17
  $region16: #{encoder_forward.1} parent=0 // pred_region
    _
  $region17: #{encoder_forward.1} parent=0 // pred_fallthru
    _
  // Predicated region
  $region18: #{encoder_forward.1} parent=0 // pred_check
    _
  $region19: #{encoder_forward.1} parent=0 // pred_check_branch
    %23 = sbr.rel (0) target = $region21
  $region20: #{encoder_forward.1} parent=0 // pred_region
    _
  $region21: #{encoder_forward.1} parent=0 // pred_fallthru
    _
  // Predicated region
  $region22: #{encoder_forward.1} parent=0 // pred_check
    _
  $region23: #{encoder_forward.1} parent=0 // pred_check_branch
    %25 = sbr.rel (0) target = $region25
  $region24: #{encoder_forward.1} parent=0 // pred_region
    _
  $region25: #{encoder_forward.1} parent=0 // pred_fallthru
    _
  // Predicated region
  $region26: #{encoder_forward.1} parent=0 // pred_check
    _
  $region27: #{encoder_forward.1} parent=0 // pred_check_branch
    %27 = sbr.rel (0) target = $region29
  $region28: #{encoder_forward.1} parent=0 // pred_region
    _
  $region29: #{encoder_forward.1} parent=0 // pred_fallthru
    _
  %v29 = vld [vmem:[%s0] sm:$0xf]
  %v30 = vld [vmem:[%s0 + $0x4] sm:$0xf]
  %v31 = vld [vmem:[%s0 + $0x8] sm:$0xf]
  %v32 = vld [vmem:[%s0 + $0xc] sm:$0xf]
  %v33 = vld [vmem:[%s0 + $0x10] sm:$0xf]
  %v34 = vld [vmem:[%s0 + $0x14] sm:$0xf]
  %v35 = vld [vmem:[%s0 + $0x18] sm:$0xf]
  %v36 = vld [vmem:[%s0 + $0x1c] sm:$0xf]
  %v37 = vld [vmem:[%s1] sm:$0xf]
  %v38 = vld [vmem:[%s1 + $0x4] sm:$0xf]
  %v39 = vld [vmem:[%s1 + $0x8] sm:$0xf]
  %v40 = vld [vmem:[%s1 + $0xc] sm:$0xf]
  %v41 = vld [vmem:[%s3] sm:$0x1]
  %v43 = vperm.slane %v41, 0
  %v53 = vunpack.c.l.b16 %v29
  %v54 = vunpack.c.l.b16 %v30
  %v55 = vunpack.c.l.b16 %v31
  %v56 = vunpack.c.l.b16 %v32
  %v57 = vunpack.c.l.b16 %v33
  %v58 = vunpack.c.l.b16 %v34
  %v59 = vunpack.c.l.b16 %v35
  %v60 = vunpack.c.l.b16 %v36
  %v61 = vpack.c.b16 %v54, %v53
  %v62 = vpack.c.b16 %v56, %v55
  %v63 = vpack.c.b16 %v58, %v57
  %v64 = vpack.c.b16 %v60, %v59
  %v69 = vunpack.c.l.b16 %v37
  %v70 = vunpack.c.l.b16 %v38
  %v71 = vunpack.c.l.b16 %v39
  %v72 = vunpack.c.l.b16 %v40
  %v73 = vpack.c.b16 %v70, %v69
  %v74 = vpack.c.b16 %v72, %v71
  %vm77 = vcmask 261120
  %v79 = vsel %vm77, %v61, 0
  %v82 = vsel %vm77, %v62, 0
  %v85 = vsel %vm77, %v63, 0
  %v88 = vsel %vm77, %v64, 0
  %90 = vmatpush.bf16.msra.mxu0 0
  %91 = vmatpush.bf16.msra.mxu0 0
  %92 = vmatpush.bf16.msra.mxu0 0
  %93 = vmatpush.bf16.msra.mxu0 0
  %94 = vmatpush.bf16.msra.mxu0 0
  %95 = vmatpush.bf16.msra.mxu0 0
  %96 = vmatpush.bf16.msra.mxu0 %v74
  %97 = vmatpush.bf16.msra.mxu0 %v73
  %98 = vmatmul.bf16.gmra.mxu0 %v79
  %v99 = vpop.f32.mrf.mxu0
  %v100 = vadd.f32 %v43, %v99
  %v101 = vpop.f32.mrf.mxu0
  %v102 = vadd.f32 %v43, %v101
  %103 = vmatmul.bf16.gmra.mxu0 %v82
  %v104 = vpop.f32.mrf.mxu0
  %v105 = vadd.f32 %v43, %v104
  %v106 = vpop.f32.mrf.mxu0
  %v107 = vadd.f32 %v43, %v106
  %108 = vmatmul.bf16.gmra.mxu0 %v85
  %v109 = vpop.f32.mrf.mxu0
  %v110 = vadd.f32 %v43, %v109
  %v111 = vpop.f32.mrf.mxu0
  %v112 = vadd.f32 %v43, %v111
  %113 = vmatmul.bf16.gmra.mxu0 %v88
  %v114 = vpop.f32.mrf.mxu0
  %v115 = vadd.f32 %v43, %v114
  %v116 = vpop.f32.mrf.mxu0
  %v117 = vadd.f32 %v43, %v116
  %118 = vdwg.mxu0
  %119 = vst [vmem:[#allocation2] sm:$0xff] %v100
  %120 = vst [vmem:[#allocation2 + $0x8] sm:$0xff] %v102
  %121 = vst [vmem:[#allocation2 + $0x10] sm:$0xff] %v105
  %122 = vst [vmem:[#allocation2 + $0x18] sm:$0xff] %v107
  %123 = vst [vmem:[#allocation2 + $0x20] sm:$0xff] %v110
  %124 = vst [vmem:[#allocation2 + $0x28] sm:$0xff] %v112
  %125 = vst [vmem:[#allocation2 + $0x30] sm:$0xff] %v115
  %126 = vst [vmem:[#allocation2 + $0x38] sm:$0xff] %v117
  %v127 = vld [vmem:[%s2] sm:$0xf]
  %v128 = vld [vmem:[%s2 + $0x4] sm:$0xf]
  %v129 = vld [vmem:[%s2 + $0x8] sm:$0xf]
  %v130 = vld [vmem:[%s2 + $0xc] sm:$0xf]
  %v131 = vld [vmem:[#allocation2] sm:$0xff]
  %v136 = vunpack.c.l.b16 %v127
  %v137 = vunpack.c.l.b16 %v128
  %v138 = vunpack.c.l.b16 %v129
  %v139 = vunpack.c.l.b16 %v130
  %v140 = vpack.c.b16 %v137, %v136
  %v141 = vpack.c.b16 %v139, %v138
  %v145 = vsel %vm77, 0, 0
  %147 = vmatpush.bf16.msra.mxu0 0
  %148 = vmatpush.bf16.msra.mxu0 0
  %149 = vmatpush.bf16.msra.mxu0 0
  %150 = vmatpush.bf16.msra.mxu0 0
  %151 = vmatpush.bf16.msra.mxu0 0
  %152 = vmatpush.bf16.msra.mxu0 0
  %153 = vmatpush.bf16.msra.mxu0 %v141
  %154 = vmatpush.bf16.msra.mxu0 %v140
  %155 = vmatmul.bf16.gmra.mxu0 %v145
  %v156 = vpop.f32.mrf.mxu0
  %v157 = vadd.f32 0.0, %v156
  %v158 = vpop.f32.mrf.mxu0
  %159 = vdwg.mxu0
  %v160 = vadd.f32 %v131, %v157
  %v161 = vxor.u32 %v160, 2147483648
  %v162 = vmul.f32 %v161, 1.442695
  %v163 = vpow.pop %v162
  %v164 = vadd.f32 %v163, 1.0
  %v165 = vrcp.pop %v164
  %v166 = vmul.f32 %v164, %v165
  %v167 = vsub.f32 1.0, %v166
  %v168 = vmul.f32 %v165, %v167
  %v169 = vadd.f32 %v165, %v168
  %vm170 = vweird.f32 %v164
  %vm171 = vweird.f32 %v165
  %vm172 = vmor %vm170, %vm171
  %v173 = vsel %vm172, %v165, %v169
  %v174 = vand.u32 2147483647, %v164
  %vm175 = vcmp.eq.f32.partialorder %v174, 8.507059e+37
  %v176 = vand.u32 %v164, 2147483648
  %v177 = vor.u32 1.1754944e-38, %v176
  %v178 = vsel %vm175, %v177, %v173
  %v179 = vmul.f32 1.0, %v178
  %v180 = vtanh.pop %v160
  %v181 = vmul.f32 %v179, 0.0
  %183 = vrot.lane.b32.xlu0 %v180, 64
  %v184 = vpop.permute.xlu0 %183
  %v186 = vmul.f32 %v179, %v184
  %188 = vrot.lane.b32.xlu0 %v186, 32
  %v189 = vpop.permute.xlu0 %188
  %v191 = vadd.f32 %v181, %v189
  %v192 = vtanh.pop %v191
  %194 = vrot.lane.b32.xlu0 %v192, 64
  %v195 = vpop.permute.xlu0 %194
  %v197 = vmul.f32 %v179, %v195
  %199 = vrot.lane.b32.xlu0 %v197, 32
  %v200 = vpop.permute.xlu0 %199
  %202 = vst.msk [vmem:[#allocation3] sm:$0xff] %vm77, %v200
  %v203 = vld [vmem:[#allocation2 + $0x8] sm:$0xff]
  %v204 = vpack.c.bf16 %v197, %v197
  %206 = vrot.lane.b32.xlu0 %v204, 32
  %v207 = vpop.permute.xlu0 %206
  %v209 = vsel %vm77, %v207, 0
  %211 = vmatpush.bf16.msra.mxu0 0
  %212 = vmatpush.bf16.msra.mxu0 0
  %213 = vmatpush.bf16.msra.mxu0 0
  %214 = vmatpush.bf16.msra.mxu0 0
  %215 = vmatpush.bf16.msra.mxu0 0
  %216 = vmatpush.bf16.msra.mxu0 0
  %217 = vmatpush.bf16.msra.mxu0 %v141
  %218 = vmatpush.bf16.msra.mxu0 %v140
  %219 = vmatmul.bf16.gmra.mxu0 %v209
  %v220 = vpop.f32.mrf.mxu0
  %v221 = vadd.f32 0.0, %v220
  %v222 = vpop.f32.mrf.mxu0
  %223 = vdwg.mxu0
  %v224 = vadd.f32 %v203, %v221
  %v225 = vxor.u32 %v224, 2147483648
  %v226 = vmul.f32 %v225, 1.442695
  %v227 = vpow.pop %v226
  %v228 = vadd.f32 %v227, 1.0
  %v229 = vrcp.pop %v228
  %v230 = vmul.f32 %v228, %v229
  %v231 = vsub.f32 1.0, %v230
  %v232 = vmul.f32 %v229, %v231
  %v233 = vadd.f32 %v229, %v232
  %vm234 = vweird.f32 %v228
  %vm235 = vweird.f32 %v229
  %vm236 = vmor %vm234, %vm235
  %v237 = vsel %vm236, %v229, %v233
  %v238 = vand.u32 2147483647, %v228
  %vm239 = vcmp.eq.f32.partialorder %v238, 8.507059e+37
  %v240 = vand.u32 %v228, 2147483648
  %v241 = vor.u32 1.1754944e-38, %v240
  %v242 = vsel %vm239, %v241, %v237
  %v243 = vmul.f32 1.0, %v242
  %v244 = vtanh.pop %v224
  %v245 = vmul.f32 %v243, %v191
  %247 = vrot.lane.b32.xlu0 %v244, 64
  %v248 = vpop.permute.xlu0 %247
  %v250 = vmul.f32 %v243, %v248
  %252 = vrot.lane.b32.xlu0 %v250, 32
  %v253 = vpop.permute.xlu0 %252
  %v255 = vadd.f32 %v245, %v253
  %v256 = vtanh.pop %v255
  %258 = vrot.lane.b32.xlu0 %v256, 64
  %v259 = vpop.permute.xlu0 %258
  %v261 = vmul.f32 %v243, %v259
  %263 = vrot.lane.b32.xlu0 %v261, 32
  %v264 = vpop.permute.xlu0 %263
  %266 = vst.msk [vmem:[#allocation3 + $0x8] sm:$0xff] %vm77, %v264
  %v267 = vld [vmem:[#allocation2 + $0x10] sm:$0xff]
  %v268 = vpack.c.bf16 %v261, %v261
  %270 = vrot.lane.b32.xlu0 %v268, 32
  %v271 = vpop.permute.xlu0 %270
  %v273 = vsel %vm77, %v271, 0
  %275 = vmatpush.bf16.msra.mxu0 0
  %276 = vmatpush.bf16.msra.mxu0 0
  %277 = vmatpush.bf16.msra.mxu0 0
  %278 = vmatpush.bf16.msra.mxu0 0
  %279 = vmatpush.bf16.msra.mxu0 0
  %280 = vmatpush.bf16.msra.mxu0 0
  %281 = vmatpush.bf16.msra.mxu0 %v141
  %282 = vmatpush.bf16.msra.mxu0 %v140
  %283 = vmatmul.bf16.gmra.mxu0 %v273
  %v284 = vpop.f32.mrf.mxu0
  %v285 = vadd.f32 0.0, %v284
  %v286 = vpop.f32.mrf.mxu0
  %287 = vdwg.mxu0
  %v288 = vadd.f32 %v267, %v285
  %v289 = vxor.u32 %v288, 2147483648
  %v290 = vmul.f32 %v289, 1.442695
  %v291 = vpow.pop %v290
  %v292 = vadd.f32 %v291, 1.0
  %v293 = vrcp.pop %v292
  %v294 = vmul.f32 %v292, %v293
  %v295 = vsub.f32 1.0, %v294
  %v296 = vmul.f32 %v293, %v295
  %v297 = vadd.f32 %v293, %v296
  %vm298 = vweird.f32 %v292
  %vm299 = vweird.f32 %v293
  %vm300 = vmor %vm298, %vm299
  %v301 = vsel %vm300, %v293, %v297
  %v302 = vand.u32 2147483647, %v292
  %vm303 = vcmp.eq.f32.partialorder %v302, 8.507059e+37
  %v304 = vand.u32 %v292, 2147483648
  %v305 = vor.u32 1.1754944e-38, %v304
  %v306 = vsel %vm303, %v305, %v301
  %v307 = vmul.f32 1.0, %v306
  %v308 = vtanh.pop %v288
  %v309 = vmul.f32 %v307, %v255
  %311 = vrot.lane.b32.xlu0 %v308, 64
  %v312 = vpop.permute.xlu0 %311
  %v314 = vmul.f32 %v307, %v312
  %316 = vrot.lane.b32.xlu0 %v314, 32
  %v317 = vpop.permute.xlu0 %316
  %v319 = vadd.f32 %v309, %v317
  %v320 = vtanh.pop %v319
  %322 = vrot.lane.b32.xlu0 %v320, 64
  %v323 = vpop.permute.xlu0 %322
  %v325 = vmul.f32 %v307, %v323
  %327 = vrot.lane.b32.xlu0 %v325, 32
  %v328 = vpop.permute.xlu0 %327
  %330 = vst.msk [vmem:[#allocation3 + $0x10] sm:$0xff] %vm77, %v328
  %v331 = vld [vmem:[#allocation2 + $0x18] sm:$0xff]
  %v332 = vpack.c.bf16 %v325, %v325
  %334 = vrot.lane.b32.xlu0 %v332, 32
  %v335 = vpop.permute.xlu0 %334
  %v337 = vsel %vm77, %v335, 0
  %339 = vmatpush.bf16.msra.mxu0 0
  %340 = vmatpush.bf16.msra.mxu0 0
  %341 = vmatpush.bf16.msra.mxu0 0
  %342 = vmatpush.bf16.msra.mxu0 0
  %343 = vmatpush.bf16.msra.mxu0 0
  %344 = vmatpush.bf16.msra.mxu0 0
  %345 = vmatpush.bf16.msra.mxu0 %v141
  %346 = vmatpush.bf16.msra.mxu0 %v140
  %347 = vmatmul.bf16.gmra.mxu0 %v337
  %v348 = vpop.f32.mrf.mxu0
  %v349 = vadd.f32 0.0, %v348
  %v350 = vpop.f32.mrf.mxu0
  %351 = vdwg.mxu0
  %v352 = vadd.f32 %v331, %v349
  %v353 = vxor.u32 %v352, 2147483648
  %v354 = vmul.f32 %v353, 1.442695
  %v355 = vpow.pop %v354
  %v356 = vadd.f32 %v355, 1.0
  %v357 = vrcp.pop %v356
  %v358 = vmul.f32 %v356, %v357
  %v359 = vsub.f32 1.0, %v358
  %v360 = vmul.f32 %v357, %v359
  %v361 = vadd.f32 %v357, %v360
  %vm362 = vweird.f32 %v356
  %vm363 = vweird.f32 %v357
  %vm364 = vmor %vm362, %vm363
  %v365 = vsel %vm364, %v357, %v361
  %v366 = vand.u32 2147483647, %v356
  %vm367 = vcmp.eq.f32.partialorder %v366, 8.507059e+37
  %v368 = vand.u32 %v356, 2147483648
  %v369 = vor.u32 1.1754944e-38, %v368
  %v370 = vsel %vm367, %v369, %v365
  %v371 = vmul.f32 1.0, %v370
  %v372 = vtanh.pop %v352
  %v373 = vmul.f32 %v371, %v319
  %375 = vrot.lane.b32.xlu0 %v372, 64
  %v376 = vpop.permute.xlu0 %375
  %v378 = vmul.f32 %v371, %v376
  %380 = vrot.lane.b32.xlu0 %v378, 32
  %v381 = vpop.permute.xlu0 %380
  %v383 = vadd.f32 %v373, %v381
  %v384 = vtanh.pop %v383
  %386 = vrot.lane.b32.xlu0 %v384, 64
  %v387 = vpop.permute.xlu0 %386
  %v389 = vmul.f32 %v371, %v387
  %391 = vrot.lane.b32.xlu0 %v389, 32
  %v392 = vpop.permute.xlu0 %391
  %394 = vst.msk [vmem:[#allocation3 + $0x18] sm:$0xff] %vm77, %v392
  %v395 = vld [vmem:[#allocation2 + $0x20] sm:$0xff]
  %v396 = vpack.c.bf16 %v389, %v389
  %398 = vrot.lane.b32.xlu0 %v396, 32
  %v399 = vpop.permute.xlu0 %398
  %v401 = vsel %vm77, %v399, 0
  %403 = vmatpush.bf16.msra.mxu0 0
  %404 = vmatpush.bf16.msra.mxu0 0
  %405 = vmatpush.bf16.msra.mxu0 0
  %406 = vmatpush.bf16.msra.mxu0 0
  %407 = vmatpush.bf16.msra.mxu0 0
  %408 = vmatpush.bf16.msra.mxu0 0
  %409 = vmatpush.bf16.msra.mxu0 %v141
  %410 = vmatpush.bf16.msra.mxu0 %v140
  %411 = vmatmul.bf16.gmra.mxu0 %v401
  %v412 = vpop.f32.mrf.mxu0
  %v413 = vadd.f32 0.0, %v412
  %v414 = vpop.f32.mrf.mxu0
  %415 = vdwg.mxu0
  %v416 = vadd.f32 %v395, %v413
  %v417 = vxor.u32 %v416, 2147483648
  %v418 = vmul.f32 %v417, 1.442695
  %v419 = vpow.pop %v418
  %v420 = vadd.f32 %v419, 1.0
  %v421 = vrcp.pop %v420
  %v422 = vmul.f32 %v420, %v421
  %v423 = vsub.f32 1.0, %v422
  %v424 = vmul.f32 %v421, %v423
  %v425 = vadd.f32 %v421, %v424
  %vm426 = vweird.f32 %v420
  %vm427 = vweird.f32 %v421
  %vm428 = vmor %vm426, %vm427
  %v429 = vsel %vm428, %v421, %v425
  %v430 = vand.u32 2147483647, %v420
  %vm431 = vcmp.eq.f32.partialorder %v430, 8.507059e+37
  %v432 = vand.u32 %v420, 2147483648
  %v433 = vor.u32 1.1754944e-38, %v432
  %v434 = vsel %vm431, %v433, %v429
  %v435 = vmul.f32 1.0, %v434
  %v436 = vtanh.pop %v416
  %v437 = vmul.f32 %v435, %v383
  %439 = vrot.lane.b32.xlu0 %v436, 64
  %v440 = vpop.permute.xlu0 %439
  %v442 = vmul.f32 %v435, %v440
  %444 = vrot.lane.b32.xlu0 %v442, 32
  %v445 = vpop.permute.xlu0 %444
  %v447 = vadd.f32 %v437, %v445
  %v448 = vtanh.pop %v447
  %450 = vrot.lane.b32.xlu0 %v448, 64
  %v451 = vpop.permute.xlu0 %450
  %v453 = vmul.f32 %v435, %v451
  %455 = vrot.lane.b32.xlu0 %v453, 32
  %v456 = vpop.permute.xlu0 %455
  %458 = vst.msk [vmem:[#allocation3 + $0x20] sm:$0xff] %vm77, %v456
  %v459 = vld [vmem:[#allocation2 + $0x28] sm:$0xff]
  %v460 = vpack.c.bf16 %v453, %v453
  %462 = vrot.lane.b32.xlu0 %v460, 32
  %v463 = vpop.permute.xlu0 %462
  %v465 = vsel %vm77, %v463, 0
  %467 = vmatpush.bf16.msra.mxu0 0
  %468 = vmatpush.bf16.msra.mxu0 0
  %469 = vmatpush.bf16.msra.mxu0 0
  %470 = vmatpush.bf16.msra.mxu0 0
  %471 = vmatpush.bf16.msra.mxu0 0
  %472 = vmatpush.bf16.msra.mxu0 0
  %473 = vmatpush.bf16.msra.mxu0 %v141
  %474 = vmatpush.bf16.msra.mxu0 %v140
  %475 = vmatmul.bf16.gmra.mxu0 %v465
  %v476 = vpop.f32.mrf.mxu0
  %v477 = vadd.f32 0.0, %v476
  %v478 = vpop.f32.mrf.mxu0
  %479 = vdwg.mxu0
  %v480 = vadd.f32 %v459, %v477
  %v481 = vxor.u32 %v480, 2147483648
  %v482 = vmul.f32 %v481, 1.442695
  %v483 = vpow.pop %v482
  %v484 = vadd.f32 %v483, 1.0
  %v485 = vrcp.pop %v484
  %v486 = vmul.f32 %v484, %v485
  %v487 = vsub.f32 1.0, %v486
  %v488 = vmul.f32 %v485, %v487
  %v489 = vadd.f32 %v485, %v488
  %vm490 = vweird.f32 %v484
  %vm491 = vweird.f32 %v485
  %vm492 = vmor %vm490, %vm491
  %v493 = vsel %vm492, %v485, %v489
  %v494 = vand.u32 2147483647, %v484
  %vm495 = vcmp.eq.f32.partialorder %v494, 8.507059e+37
  %v496 = vand.u32 %v484, 2147483648
  %v497 = vor.u32 1.1754944e-38, %v496
  %v498 = vsel %vm495, %v497, %v493
  %v499 = vmul.f32 1.0, %v498
  %v500 = vtanh.pop %v480
  %v501 = vmul.f32 %v499, %v447
  %503 = vrot.lane.b32.xlu0 %v500, 64
  %v504 = vpop.permute.xlu0 %503
  %v506 = vmul.f32 %v499, %v504
  %508 = vrot.lane.b32.xlu0 %v506, 32
  %v509 = vpop.permute.xlu0 %508
  %v511 = vadd.f32 %v501, %v509
  %v512 = vtanh.pop %v511
  %514 = vrot.lane.b32.xlu0 %v512, 64
  %v515 = vpop.permute.xlu0 %514
  %v517 = vmul.f32 %v499, %v515
  %519 = vrot.lane.b32.xlu0 %v517, 32
  %v520 = vpop.permute.xlu0 %519
  %522 = vst.msk [vmem:[#allocation3 + $0x28] sm:$0xff] %vm77, %v520
  %v523 = vld [vmem:[#allocation2 + $0x30] sm:$0xff]
  %v524 = vpack.c.bf16 %v517, %v517
  %526 = vrot.lane.b32.xlu0 %v524, 32
  %v527 = vpop.permute.xlu0 %526
  %v529 = vsel %vm77, %v527, 0
  %531 = vmatpush.bf16.msra.mxu0 0
  %532 = vmatpush.bf16.msra.mxu0 0
  %533 = vmatpush.bf16.msra.mxu0 0
  %534 = vmatpush.bf16.msra.mxu0 0
  %535 = vmatpush.bf16.msra.mxu0 0
  %536 = vmatpush.bf16.msra.mxu0 0
  %537 = vmatpush.bf16.msra.mxu0 %v141
  %538 = vmatpush.bf16.msra.mxu0 %v140
  %539 = vmatmul.bf16.gmra.mxu0 %v529
  %v540 = vpop.f32.mrf.mxu0
  %v541 = vadd.f32 0.0, %v540
  %v542 = vpop.f32.mrf.mxu0
  %543 = vdwg.mxu0
  %v544 = vadd.f32 %v523, %v541
  %v545 = vxor.u32 %v544, 2147483648
  %v546 = vmul.f32 %v545, 1.442695
  %v547 = vpow.pop %v546
  %v548 = vadd.f32 %v547, 1.0
  %v549 = vrcp.pop %v548
  %v550 = vmul.f32 %v548, %v549
  %v551 = vsub.f32 1.0, %v550
  %v552 = vmul.f32 %v549, %v551
  %v553 = vadd.f32 %v549, %v552
  %vm554 = vweird.f32 %v548
  %vm555 = vweird.f32 %v549
  %vm556 = vmor %vm554, %vm555
  %v557 = vsel %vm556, %v549, %v553
  %v558 = vand.u32 2147483647, %v548
  %vm559 = vcmp.eq.f32.partialorder %v558, 8.507059e+37
  %v560 = vand.u32 %v548, 2147483648
  %v561 = vor.u32 1.1754944e-38, %v560
  %v562 = vsel %vm559, %v561, %v557
  %v563 = vmul.f32 1.0, %v562
  %v564 = vtanh.pop %v544
  %v565 = vmul.f32 %v563, %v511
  %567 = vrot.lane.b32.xlu0 %v564, 64
  %v568 = vpop.permute.xlu0 %567
  %v570 = vmul.f32 %v563, %v568
  %572 = vrot.lane.b32.xlu0 %v570, 32
  %v573 = vpop.permute.xlu0 %572
  %v575 = vadd.f32 %v565, %v573
  %v576 = vtanh.pop %v575
  %578 = vrot.lane.b32.xlu0 %v576, 64
  %v579 = vpop.permute.xlu0 %578
  %v581 = vmul.f32 %v563, %v579
  %583 = vrot.lane.b32.xlu0 %v581, 32
  %v584 = vpop.permute.xlu0 %583
  %586 = vst.msk [vmem:[#allocation3 + $0x30] sm:$0xff] %vm77, %v584
  %v587 = vld [vmem:[#allocation2 + $0x38] sm:$0xff]
  %v588 = vpack.c.bf16 %v581, %v581
  %590 = vrot.lane.b32.xlu0 %v588, 32
  %v591 = vpop.permute.xlu0 %590
  %v593 = vsel %vm77, %v591, 0
  %595 = vmatpush.bf16.msra.mxu0 0
  %596 = vmatpush.bf16.msra.mxu0 0
  %597 = vmatpush.bf16.msra.mxu0 0
  %598 = vmatpush.bf16.msra.mxu0 0
  %599 = vmatpush.bf16.msra.mxu0 0
  %600 = vmatpush.bf16.msra.mxu0 0
  %601 = vmatpush.bf16.msra.mxu0 %v141
  %602 = vmatpush.bf16.msra.mxu0 %v140
  %603 = vmatmul.bf16.gmra.mxu0 %v593
  %v604 = vpop.f32.mrf.mxu0
  %v605 = vadd.f32 0.0, %v604
  %v606 = vpop.f32.mrf.mxu0
  %607 = vdwg.mxu0
  %v608 = vadd.f32 %v587, %v605
  %v609 = vxor.u32 %v608, 2147483648
  %v610 = vmul.f32 %v609, 1.442695
  %v611 = vpow.pop %v610
  %v612 = vadd.f32 %v611, 1.0
  %v613 = vrcp.pop %v612
  %v614 = vmul.f32 %v612, %v613
  %v615 = vsub.f32 1.0, %v614
  %v616 = vmul.f32 %v613, %v615
  %v617 = vadd.f32 %v613, %v616
  %vm618 = vweird.f32 %v612
  %vm619 = vweird.f32 %v613
  %vm620 = vmor %vm618, %vm619
  %v621 = vsel %vm620, %v613, %v617
  %v622 = vand.u32 2147483647, %v612
  %vm623 = vcmp.eq.f32.partialorder %v622, 8.507059e+37
  %v624 = vand.u32 %v612, 2147483648
  %v625 = vor.u32 1.1754944e-38, %v624
  %v626 = vsel %vm623, %v625, %v621
  %v627 = vmul.f32 1.0, %v626
  %v628 = vtanh.pop %v608
  %v629 = vmul.f32 %v627, %v575
  %631 = vrot.lane.b32.xlu0 %v628, 64
  %v632 = vpop.permute.xlu0 %631
  %v634 = vmul.f32 %v627, %v632
  %636 = vrot.lane.b32.xlu0 %v634, 32
  %v637 = vpop.permute.xlu0 %636
  %v639 = vadd.f32 %v629, %v637
  %v640 = vtanh.pop %v639
  %642 = vrot.lane.b32.xlu0 %v640, 64
  %v643 = vpop.permute.xlu0 %642
  %v645 = vmul.f32 %v627, %v643
  %647 = vrot.lane.b32.xlu0 %v645, 32
  %v648 = vpop.permute.xlu0 %647
  %650 = vst.msk [vmem:[#allocation3 + $0x38] sm:$0xff] %vm77, %v648
  %651 = vst.msk [vmem:[%s7] sm:$0xff] %vm77, %v648
  %653 = vrot.lane.b32.xlu0 %v639, 96
  %v654 = vpop.permute.xlu0 %653
  %656 = vst.msk [vmem:[%s8] sm:$0xff] %vm77, %v654
  %v657 = vld [vmem:[#allocation3] sm:$0xff]
  %v658 = vld [vmem:[#allocation3 + $0x8] sm:$0xff]
  %v659 = vld [vmem:[#allocation3 + $0x10] sm:$0xff]
  %v660 = vld [vmem:[#allocation3 + $0x18] sm:$0xff]
  %v661 = vld [vmem:[#allocation3 + $0x20] sm:$0xff]
  %v662 = vld [vmem:[#allocation3 + $0x28] sm:$0xff]
  %v663 = vld [vmem:[#allocation3 + $0x30] sm:$0xff]
  %v664 = vld [vmem:[#allocation3 + $0x38] sm:$0xff]
  %v665 = vpack.c.bf16 %v658, %v657
  %v666 = vpack.c.bf16 %v660, %v659
  %v667 = vpack.c.bf16 %v662, %v661
  %v668 = vpack.c.bf16 %v664, %v663
  %v669 = vld [vmem:[%s4] sm:$0xf]
  %v670 = vld [vmem:[%s4 + $0x4] sm:$0xf]
  %v671 = vld [vmem:[%s4 + $0x8] sm:$0xf]
  %v672 = vld [vmem:[%s4 + $0xc] sm:$0xf]
  %v673 = vld [vmem:[%s6] sm:$0x1]
  %v675 = vperm.slane %v673, 0
  %v681 = vunpack.c.l.b16 %v669
  %v682 = vunpack.c.l.b16 %v670
  %v683 = vunpack.c.l.b16 %v671
  %v684 = vunpack.c.l.b16 %v672
  %v685 = vpack.c.b16 %v682, %v681
  %v686 = vpack.c.b16 %v684, %v683
  %v690 = vsel %vm77, %v665, 0
  %v693 = vsel %vm77, %v666, 0
  %v696 = vsel %vm77, %v667, 0
  %v699 = vsel %vm77, %v668, 0
  %701 = vmatpush.bf16.msra.mxu0 0
  %702 = vmatpush.bf16.msra.mxu0 0
  %703 = vmatpush.bf16.msra.mxu0 0
  %704 = vmatpush.bf16.msra.mxu0 0
  %705 = vmatpush.bf16.msra.mxu0 0
  %706 = vmatpush.bf16.msra.mxu0 0
  %707 = vmatpush.bf16.msra.mxu0 %v686
  %708 = vmatpush.bf16.msra.mxu0 %v685
  %709 = vmatmul.bf16.gmra.mxu0 %v690
  %v710 = vpop.f32.mrf.mxu0
  %v711 = vadd.f32 %v675, %v710
  %v712 = vpop.f32.mrf.mxu0
  %v713 = vadd.f32 %v675, %v712
  %714 = vmatmul.bf16.gmra.mxu0 %v693
  %v715 = vpop.f32.mrf.mxu0
  %v716 = vadd.f32 %v675, %v715
  %v717 = vpop.f32.mrf.mxu0
  %v718 = vadd.f32 %v675, %v717
  %719 = vmatmul.bf16.gmra.mxu0 %v696
  %v720 = vpop.f32.mrf.mxu0
  %v721 = vadd.f32 %v675, %v720
  %v722 = vpop.f32.mrf.mxu0
  %v723 = vadd.f32 %v675, %v722
  %724 = vmatmul.bf16.gmra.mxu0 %v699
  %v725 = vpop.f32.mrf.mxu0
  %v726 = vadd.f32 %v675, %v725
  %v727 = vpop.f32.mrf.mxu0
  %v728 = vadd.f32 %v675, %v727
  %729 = vdwg.mxu0
  %730 = vst [vmem:[#allocation2] sm:$0xff] %v711
  %731 = vst [vmem:[#allocation2 + $0x8] sm:$0xff] %v713
  %732 = vst [vmem:[#allocation2 + $0x10] sm:$0xff] %v716
  %733 = vst [vmem:[#allocation2 + $0x18] sm:$0xff] %v718
  %734 = vst [vmem:[#allocation2 + $0x20] sm:$0xff] %v721
  %735 = vst [vmem:[#allocation2 + $0x28] sm:$0xff] %v723
  %736 = vst [vmem:[#allocation2 + $0x30] sm:$0xff] %v726
  %737 = vst [vmem:[#allocation2 + $0x38] sm:$0xff] %v728
  %v738 = vld [vmem:[%s5] sm:$0xf]
  %v739 = vld [vmem:[%s5 + $0x4] sm:$0xf]
  %v740 = vld [vmem:[%s5 + $0x8] sm:$0xf]
  %v741 = vld [vmem:[%s5 + $0xc] sm:$0xf]
  %v742 = vld [vmem:[#allocation2] sm:$0xff]
  %v747 = vunpack.c.l.b16 %v738
  %v748 = vunpack.c.l.b16 %v739
  %v749 = vunpack.c.l.b16 %v740
  %v750 = vunpack.c.l.b16 %v741
  %v751 = vpack.c.b16 %v748, %v747
  %v752 = vpack.c.b16 %v750, %v749
  %755 = vmatpush.bf16.msra.mxu0 0
  %756 = vmatpush.bf16.msra.mxu0 0
  %757 = vmatpush.bf16.msra.mxu0 0
  %758 = vmatpush.bf16.msra.mxu0 0
  %759 = vmatpush.bf16.msra.mxu0 0
  %760 = vmatpush.bf16.msra.mxu0 0
  %761 = vmatpush.bf16.msra.mxu0 %v752
  %762 = vmatpush.bf16.msra.mxu0 %v751
  %763 = vmatmul.bf16.gmra.mxu0 %v145
  %v764 = vpop.f32.mrf.mxu0
  %v765 = vadd.f32 0.0, %v764
  %v766 = vpop.f32.mrf.mxu0
  %767 = vdwg.mxu0
  %v768 = vadd.f32 %v742, %v765
  %v769 = vxor.u32 %v768, 2147483648
  %v770 = vmul.f32 %v769, 1.442695
  %v771 = vpow.pop %v770
  %v772 = vadd.f32 %v771, 1.0
  %v773 = vrcp.pop %v772
  %v774 = vmul.f32 %v772, %v773
  %v775 = vsub.f32 1.0, %v774
  %v776 = vmul.f32 %v773, %v775
  %v777 = vadd.f32 %v773, %v776
  %vm778 = vweird.f32 %v772
  %vm779 = vweird.f32 %v773
  %vm780 = vmor %vm778, %vm779
  %v781 = vsel %vm780, %v773, %v777
  %v782 = vand.u32 2147483647, %v772
  %vm783 = vcmp.eq.f32.partialorder %v782, 8.507059e+37
  %v784 = vand.u32 %v772, 2147483648
  %v785 = vor.u32 1.1754944e-38, %v784
  %v786 = vsel %vm783, %v785, %v781
  %v787 = vmul.f32 1.0, %v786
  %v788 = vtanh.pop %v768
  %v789 = vmul.f32 %v787, 0.0
  %791 = vrot.lane.b32.xlu0 %v788, 64
  %v792 = vpop.permute.xlu0 %791
  %v794 = vmul.f32 %v787, %v792
  %796 = vrot.lane.b32.xlu0 %v794, 32
  %v797 = vpop.permute.xlu0 %796
  %v799 = vadd.f32 %v789, %v797
  %v800 = vtanh.pop %v799
  %802 = vrot.lane.b32.xlu0 %v800, 64
  %v803 = vpop.permute.xlu0 %802
  %v805 = vmul.f32 %v787, %v803
  %807 = vrot.lane.b32.xlu0 %v805, 32
  %v808 = vpop.permute.xlu0 %807
  %810 = vst.msk [vmem:[#allocation4] sm:$0xff] %vm77, %v808
  %v811 = vld [vmem:[#allocation2 + $0x8] sm:$0xff]
  %v812 = vpack.c.bf16 %v805, %v805
  %814 = vrot.lane.b32.xlu0 %v812, 32
  %v815 = vpop.permute.xlu0 %814
  %v817 = vsel %vm77, %v815, 0
  %819 = vmatpush.bf16.msra.mxu0 0
  %820 = vmatpush.bf16.msra.mxu0 0
  %821 = vmatpush.bf16.msra.mxu0 0
  %822 = vmatpush.bf16.msra.mxu0 0
  %823 = vmatpush.bf16.msra.mxu0 0
  %824 = vmatpush.bf16.msra.mxu0 0
  %825 = vmatpush.bf16.msra.mxu0 %v752
  %826 = vmatpush.bf16.msra.mxu0 %v751
  %827 = vmatmul.bf16.gmra.mxu0 %v817
  %v828 = vpop.f32.mrf.mxu0
  %v829 = vadd.f32 0.0, %v828
  %v830 = vpop.f32.mrf.mxu0
  %831 = vdwg.mxu0
  %v832 = vadd.f32 %v811, %v829
  %v833 = vxor.u32 %v832, 2147483648
  %v834 = vmul.f32 %v833, 1.442695
  %v835 = vpow.pop %v834
  %v836 = vadd.f32 %v835, 1.0
  %v837 = vrcp.pop %v836
  %v838 = vmul.f32 %v836, %v837
  %v839 = vsub.f32 1.0, %v838
  %v840 = vmul.f32 %v837, %v839
  %v841 = vadd.f32 %v837, %v840
  %vm842 = vweird.f32 %v836
  %vm843 = vweird.f32 %v837
  %vm844 = vmor %vm842, %vm843
  %v845 = vsel %vm844, %v837, %v841
  %v846 = vand.u32 2147483647, %v836
  %vm847 = vcmp.eq.f32.partialorder %v846, 8.507059e+37
  %v848 = vand.u32 %v836, 2147483648
  %v849 = vor.u32 1.1754944e-38, %v848
  %v850 = vsel %vm847, %v849, %v845
  %v851 = vmul.f32 1.0, %v850
  %v852 = vtanh.pop %v832
  %v853 = vmul.f32 %v851, %v799
  %855 = vrot.lane.b32.xlu0 %v852, 64
  %v856 = vpop.permute.xlu0 %855
  %v858 = vmul.f32 %v851, %v856
  %860 = vrot.lane.b32.xlu0 %v858, 32
  %v861 = vpop.permute.xlu0 %860
  %v863 = vadd.f32 %v853, %v861
  %v864 = vtanh.pop %v863
  %866 = vrot.lane.b32.xlu0 %v864, 64
  %v867 = vpop.permute.xlu0 %866
  %v869 = vmul.f32 %v851, %v867
  %871 = vrot.lane.b32.xlu0 %v869, 32
  %v872 = vpop.permute.xlu0 %871
  %874 = vst.msk [vmem:[#allocation4 + $0x8] sm:$0xff] %vm77, %v872
  %v875 = vld [vmem:[#allocation2 + $0x10] sm:$0xff]
  %v876 = vpack.c.bf16 %v869, %v869
  %878 = vrot.lane.b32.xlu0 %v876, 32
  %v879 = vpop.permute.xlu0 %878
  %v881 = vsel %vm77, %v879, 0
  %883 = vmatpush.bf16.msra.mxu0 0
  %884 = vmatpush.bf16.msra.mxu0 0
  %885 = vmatpush.bf16.msra.mxu0 0
  %886 = vmatpush.bf16.msra.mxu0 0
  %887 = vmatpush.bf16.msra.mxu0 0
  %888 = vmatpush.bf16.msra.mxu0 0
  %889 = vmatpush.bf16.msra.mxu0 %v752
  %890 = vmatpush.bf16.msra.mxu0 %v751
  %891 = vmatmul.bf16.gmra.mxu0 %v881
  %v892 = vpop.f32.mrf.mxu0
  %v893 = vadd.f32 0.0, %v892
  %v894 = vpop.f32.mrf.mxu0
  %895 = vdwg.mxu0
  %v896 = vadd.f32 %v875, %v893
  %v897 = vxor.u32 %v896, 2147483648
  %v898 = vmul.f32 %v897, 1.442695
  %v899 = vpow.pop %v898
  %v900 = vadd.f32 %v899, 1.0
  %v901 = vrcp.pop %v900
  %v902 = vmul.f32 %v900, %v901
  %v903 = vsub.f32 1.0, %v902
  %v904 = vmul.f32 %v901, %v903
  %v905 = vadd.f32 %v901, %v904
  %vm906 = vweird.f32 %v900
  %vm907 = vweird.f32 %v901
  %vm908 = vmor %vm906, %vm907
  %v909 = vsel %vm908, %v901, %v905
  %v910 = vand.u32 2147483647, %v900
  %vm911 = vcmp.eq.f32.partialorder %v910, 8.507059e+37
  %v912 = vand.u32 %v900, 2147483648
  %v913 = vor.u32 1.1754944e-38, %v912
  %v914 = vsel %vm911, %v913, %v909
  %v915 = vmul.f32 1.0, %v914
  %v916 = vtanh.pop %v896
  %v917 = vmul.f32 %v915, %v863
  %919 = vrot.lane.b32.xlu0 %v916, 64
  %v920 = vpop.permute.xlu0 %919
  %v922 = vmul.f32 %v915, %v920
  %924 = vrot.lane.b32.xlu0 %v922, 32
  %v925 = vpop.permute.xlu0 %924
  %v927 = vadd.f32 %v917, %v925
  %v928 = vtanh.pop %v927
  %930 = vrot.lane.b32.xlu0 %v928, 64
  %v931 = vpop.permute.xlu0 %930
  %v933 = vmul.f32 %v915, %v931
  %935 = vrot.lane.b32.xlu0 %v933, 32
  %v936 = vpop.permute.xlu0 %935
  %938 = vst.msk [vmem:[#allocation4 + $0x10] sm:$0xff] %vm77, %v936
  %v939 = vld [vmem:[#allocation2 + $0x18] sm:$0xff]
  %v940 = vpack.c.bf16 %v933, %v933
  %942 = vrot.lane.b32.xlu0 %v940, 32
  %v943 = vpop.permute.xlu0 %942
  %v945 = vsel %vm77, %v943, 0
  %947 = vmatpush.bf16.msra.mxu0 0
  %948 = vmatpush.bf16.msra.mxu0 0
  %949 = vmatpush.bf16.msra.mxu0 0
  %950 = vmatpush.bf16.msra.mxu0 0
  %951 = vmatpush.bf16.msra.mxu0 0
  %952 = vmatpush.bf16.msra.mxu0 0
  %953 = vmatpush.bf16.msra.mxu0 %v752
  %954 = vmatpush.bf16.msra.mxu0 %v751
  %955 = vmatmul.bf16.gmra.mxu0 %v945
  %v956 = vpop.f32.mrf.mxu0
  %v957 = vadd.f32 0.0, %v956
  %v958 = vpop.f32.mrf.mxu0
  %959 = vdwg.mxu0
  %v960 = vadd.f32 %v939, %v957
  %v961 = vxor.u32 %v960, 2147483648
  %v962 = vmul.f32 %v961, 1.442695
  %v963 = vpow.pop %v962
  %v964 = vadd.f32 %v963, 1.0
  %v965 = vrcp.pop %v964
  %v966 = vmul.f32 %v964, %v965
  %v967 = vsub.f32 1.0, %v966
  %v968 = vmul.f32 %v965, %v967
  %v969 = vadd.f32 %v965, %v968
  %vm970 = vweird.f32 %v964
  %vm971 = vweird.f32 %v965
  %vm972 = vmor %vm970, %vm971
  %v973 = vsel %vm972, %v965, %v969
  %v974 = vand.u32 2147483647, %v964
  %vm975 = vcmp.eq.f32.partialorder %v974, 8.507059e+37
  %v976 = vand.u32 %v964, 2147483648
  %v977 = vor.u32 1.1754944e-38, %v976
  %v978 = vsel %vm975, %v977, %v973
  %v979 = vmul.f32 1.0, %v978
  %v980 = vtanh.pop %v960
  %v981 = vmul.f32 %v979, %v927
  %983 = vrot.lane.b32.xlu0 %v980, 64
  %v984 = vpop.permute.xlu0 %983
  %v986 = vmul.f32 %v979, %v984
  %988 = vrot.lane.b32.xlu0 %v986, 32
  %v989 = vpop.permute.xlu0 %988
  %v991 = vadd.f32 %v981, %v989
  %v992 = vtanh.pop %v991
  %994 = vrot.lane.b32.xlu0 %v992, 64
  %v995 = vpop.permute.xlu0 %994
  %v997 = vmul.f32 %v979, %v995
  %999 = vrot.lane.b32.xlu0 %v997, 32
  %v1000 = vpop.permute.xlu0 %999
  %1002 = vst.msk [vmem:[#allocation4 + $0x18] sm:$0xff] %vm77, %v1000
  %v1003 = vld [vmem:[#allocation2 + $0x20] sm:$0xff]
  %v1004 = vpack.c.bf16 %v997, %v997
  %1006 = vrot.lane.b32.xlu0 %v1004, 32
  %v1007 = vpop.permute.xlu0 %1006
  %v1009 = vsel %vm77, %v1007, 0
  %1011 = vmatpush.bf16.msra.mxu0 0
  %1012 = vmatpush.bf16.msra.mxu0 0
  %1013 = vmatpush.bf16.msra.mxu0 0
  %1014 = vmatpush.bf16.msra.mxu0 0
  %1015 = vmatpush.bf16.msra.mxu0 0
  %1016 = vmatpush.bf16.msra.mxu0 0
  %1017 = vmatpush.bf16.msra.mxu0 %v752
  %1018 = vmatpush.bf16.msra.mxu0 %v751
  %1019 = vmatmul.bf16.gmra.mxu0 %v1009
  %v1020 = vpop.f32.mrf.mxu0
  %v1021 = vadd.f32 0.0, %v1020
  %v1022 = vpop.f32.mrf.mxu0
  %1023 = vdwg.mxu0
  %v1024 = vadd.f32 %v1003, %v1021
  %v1025 = vxor.u32 %v1024, 2147483648
  %v1026 = vmul.f32 %v1025, 1.442695
  %v1027 = vpow.pop %v1026
  %v1028 = vadd.f32 %v1027, 1.0
  %v1029 = vrcp.pop %v1028
  %v1030 = vmul.f32 %v1028, %v1029
  %v1031 = vsub.f32 1.0, %v1030
  %v1032 = vmul.f32 %v1029, %v1031
  %v1033 = vadd.f32 %v1029, %v1032
  %vm1034 = vweird.f32 %v1028
  %vm1035 = vweird.f32 %v1029
  %vm1036 = vmor %vm1034, %vm1035
  %v1037 = vsel %vm1036, %v1029, %v1033
  %v1038 = vand.u32 2147483647, %v1028
  %vm1039 = vcmp.eq.f32.partialorder %v1038, 8.507059e+37
  %v1040 = vand.u32 %v1028, 2147483648
  %v1041 = vor.u32 1.1754944e-38, %v1040
  %v1042 = vsel %vm1039, %v1041, %v1037
  %v1043 = vmul.f32 1.0, %v1042
  %v1044 = vtanh.pop %v1024
  %v1045 = vmul.f32 %v1043, %v991
  %1047 = vrot.lane.b32.xlu0 %v1044, 64
  %v1048 = vpop.permute.xlu0 %1047
  %v1050 = vmul.f32 %v1043, %v1048
  %1052 = vrot.lane.b32.xlu0 %v1050, 32
  %v1053 = vpop.permute.xlu0 %1052
  %v1055 = vadd.f32 %v1045, %v1053
  %v1056 = vtanh.pop %v1055
  %1058 = vrot.lane.b32.xlu0 %v1056, 64
  %v1059 = vpop.permute.xlu0 %1058
  %v1061 = vmul.f32 %v1043, %v1059
  %1063 = vrot.lane.b32.xlu0 %v1061, 32
  %v1064 = vpop.permute.xlu0 %1063
  %1066 = vst.msk [vmem:[#allocation4 + $0x20] sm:$0xff] %vm77, %v1064
  %v1067 = vld [vmem:[#allocation2 + $0x28] sm:$0xff]
  %v1068 = vpack.c.bf16 %v1061, %v1061
  %1070 = vrot.lane.b32.xlu0 %v1068, 32
  %v1071 = vpop.permute.xlu0 %1070
  %v1073 = vsel %vm77, %v1071, 0
  %1075 = vmatpush.bf16.msra.mxu0 0
  %1076 = vmatpush.bf16.msra.mxu0 0
  %1077 = vmatpush.bf16.msra.mxu0 0
  %1078 = vmatpush.bf16.msra.mxu0 0
  %1079 = vmatpush.bf16.msra.mxu0 0
  %1080 = vmatpush.bf16.msra.mxu0 0
  %1081 = vmatpush.bf16.msra.mxu0 %v752
  %1082 = vmatpush.bf16.msra.mxu0 %v751
  %1083 = vmatmul.bf16.gmra.mxu0 %v1073
  %v1084 = vpop.f32.mrf.mxu0
  %v1085 = vadd.f32 0.0, %v1084
  %v1086 = vpop.f32.mrf.mxu0
  %1087 = vdwg.mxu0
  %v1088 = vadd.f32 %v1067, %v1085
  %v1089 = vxor.u32 %v1088, 2147483648
  %v1090 = vmul.f32 %v1089, 1.442695
  %v1091 = vpow.pop %v1090
  %v1092 = vadd.f32 %v1091, 1.0
  %v1093 = vrcp.pop %v1092
  %v1094 = vmul.f32 %v1092, %v1093
  %v1095 = vsub.f32 1.0, %v1094
  %v1096 = vmul.f32 %v1093, %v1095
  %v1097 = vadd.f32 %v1093, %v1096
  %vm1098 = vweird.f32 %v1092
  %vm1099 = vweird.f32 %v1093
  %vm1100 = vmor %vm1098, %vm1099
  %v1101 = vsel %vm1100, %v1093, %v1097
  %v1102 = vand.u32 2147483647, %v1092
  %vm1103 = vcmp.eq.f32.partialorder %v1102, 8.507059e+37
  %v1104 = vand.u32 %v1092, 2147483648
  %v1105 = vor.u32 1.1754944e-38, %v1104
  %v1106 = vsel %vm1103, %v1105, %v1101
  %v1107 = vmul.f32 1.0, %v1106
  %v1108 = vtanh.pop %v1088
  %v1109 = vmul.f32 %v1107, %v1055
  %1111 = vrot.lane.b32.xlu0 %v1108, 64
  %v1112 = vpop.permute.xlu0 %1111
  %v1114 = vmul.f32 %v1107, %v1112
  %1116 = vrot.lane.b32.xlu0 %v1114, 32
  %v1117 = vpop.permute.xlu0 %1116
  %v1119 = vadd.f32 %v1109, %v1117
  %v1120 = vtanh.pop %v1119
  %1122 = vrot.lane.b32.xlu0 %v1120, 64
  %v1123 = vpop.permute.xlu0 %1122
  %v1125 = vmul.f32 %v1107, %v1123
  %1127 = vrot.lane.b32.xlu0 %v1125, 32
  %v1128 = vpop.permute.xlu0 %1127
  %1130 = vst.msk [vmem:[#allocation4 + $0x28] sm:$0xff] %vm77, %v1128
  %v1131 = vld [vmem:[#allocation2 + $0x30] sm:$0xff]
  %v1132 = vpack.c.bf16 %v1125, %v1125
  %1134 = vrot.lane.b32.xlu0 %v1132, 32
  %v1135 = vpop.permute.xlu0 %1134
  %v1137 = vsel %vm77, %v1135, 0
  %1139 = vmatpush.bf16.msra.mxu0 0
  %1140 = vmatpush.bf16.msra.mxu0 0
  %1141 = vmatpush.bf16.msra.mxu0 0
  %1142 = vmatpush.bf16.msra.mxu0 0
  %1143 = vmatpush.bf16.msra.mxu0 0
  %1144 = vmatpush.bf16.msra.mxu0 0
  %1145 = vmatpush.bf16.msra.mxu0 %v752
  %1146 = vmatpush.bf16.msra.mxu0 %v751
  %1147 = vmatmul.bf16.gmra.mxu0 %v1137
  %v1148 = vpop.f32.mrf.mxu0
  %v1149 = vadd.f32 0.0, %v1148
  %v1150 = vpop.f32.mrf.mxu0
  %1151 = vdwg.mxu0
  %v1152 = vadd.f32 %v1131, %v1149
  %v1153 = vxor.u32 %v1152, 2147483648
  %v1154 = vmul.f32 %v1153, 1.442695
  %v1155 = vpow.pop %v1154
  %v1156 = vadd.f32 %v1155, 1.0
  %v1157 = vrcp.pop %v1156
  %v1158 = vmul.f32 %v1156, %v1157
  %v1159 = vsub.f32 1.0, %v1158
  %v1160 = vmul.f32 %v1157, %v1159
  %v1161 = vadd.f32 %v1157, %v1160
  %vm1162 = vweird.f32 %v1156
  %vm1163 = vweird.f32 %v1157
  %vm1164 = vmor %vm1162, %vm1163
  %v1165 = vsel %vm1164, %v1157, %v1161
  %v1166 = vand.u32 2147483647, %v1156
  %vm1167 = vcmp.eq.f32.partialorder %v1166, 8.507059e+37
  %v1168 = vand.u32 %v1156, 2147483648
  %v1169 = vor.u32 1.1754944e-38, %v1168
  %v1170 = vsel %vm1167, %v1169, %v1165
  %v1171 = vmul.f32 1.0, %v1170
  %v1172 = vtanh.pop %v1152
  %v1173 = vmul.f32 %v1171, %v1119
  %1175 = vrot.lane.b32.xlu0 %v1172, 64
  %v1176 = vpop.permute.xlu0 %1175
  %v1178 = vmul.f32 %v1171, %v1176
  %1180 = vrot.lane.b32.xlu0 %v1178, 32
  %v1181 = vpop.permute.xlu0 %1180
  %v1183 = vadd.f32 %v1173, %v1181
  %v1184 = vtanh.pop %v1183
  %1186 = vrot.lane.b32.xlu0 %v1184, 64
  %v1187 = vpop.permute.xlu0 %1186
  %v1189 = vmul.f32 %v1171, %v1187
  %1191 = vrot.lane.b32.xlu0 %v1189, 32
  %v1192 = vpop.permute.xlu0 %1191
  %1194 = vst.msk [vmem:[#allocation4 + $0x30] sm:$0xff] %vm77, %v1192
  %v1195 = vld [vmem:[#allocation2 + $0x38] sm:$0xff]
  %v1196 = vpack.c.bf16 %v1189, %v1189
  %1198 = vrot.lane.b32.xlu0 %v1196, 32
  %v1199 = vpop.permute.xlu0 %1198
  %v1201 = vsel %vm77, %v1199, 0
  %1203 = vmatpush.bf16.msra.mxu0 0
  %1204 = vmatpush.bf16.msra.mxu0 0
  %1205 = vmatpush.bf16.msra.mxu0 0
  %1206 = vmatpush.bf16.msra.mxu0 0
  %1207 = vmatpush.bf16.msra.mxu0 0
  %1208 = vmatpush.bf16.msra.mxu0 0
  %1209 = vmatpush.bf16.msra.mxu0 %v752
  %1210 = vmatpush.bf16.msra.mxu0 %v751
  %1211 = vmatmul.bf16.gmra.mxu0 %v1201
  %v1212 = vpop.f32.mrf.mxu0
  %v1213 = vadd.f32 0.0, %v1212
  %v1214 = vpop.f32.mrf.mxu0
  %1215 = vdwg.mxu0
  %v1216 = vadd.f32 %v1195, %v1213
  %v1217 = vxor.u32 %v1216, 2147483648
  %v1218 = vmul.f32 %v1217, 1.442695
  %v1219 = vpow.pop %v1218
  %v1220 = vadd.f32 %v1219, 1.0
  %v1221 = vrcp.pop %v1220
  %v1222 = vmul.f32 %v1220, %v1221
  %v1223 = vsub.f32 1.0, %v1222
  %v1224 = vmul.f32 %v1221, %v1223
  %v1225 = vadd.f32 %v1221, %v1224
  %vm1226 = vweird.f32 %v1220
  %vm1227 = vweird.f32 %v1221
  %vm1228 = vmor %vm1226, %vm1227
  %v1229 = vsel %vm1228, %v1221, %v1225
  %v1230 = vand.u32 2147483647, %v1220
  %vm1231 = vcmp.eq.f32.partialorder %v1230, 8.507059e+37
  %v1232 = vand.u32 %v1220, 2147483648
  %v1233 = vor.u32 1.1754944e-38, %v1232
  %v1234 = vsel %vm1231, %v1233, %v1229
  %v1235 = vmul.f32 1.0, %v1234
  %v1236 = vtanh.pop %v1216
  %v1237 = vmul.f32 %v1235, %v1183
  %1239 = vrot.lane.b32.xlu0 %v1236, 64
  %v1240 = vpop.permute.xlu0 %1239
  %v1242 = vmul.f32 %v1235, %v1240
  %1244 = vrot.lane.b32.xlu0 %v1242, 32
  %v1245 = vpop.permute.xlu0 %1244
  %v1247 = vadd.f32 %v1237, %v1245
  %v1248 = vtanh.pop %v1247
  %1250 = vrot.lane.b32.xlu0 %v1248, 64
  %v1251 = vpop.permute.xlu0 %1250
  %v1253 = vmul.f32 %v1235, %v1251
  %1255 = vrot.lane.b32.xlu0 %v1253, 32
  %v1256 = vpop.permute.xlu0 %1255
  %1258 = vst.msk [vmem:[#allocation4 + $0x38] sm:$0xff] %vm77, %v1256
  %s1259 = scalar_lea.vmem %s7, 8
  %1260 = vst.msk [vmem:[%s1259] sm:$0xff] %vm77, %v1256
  %1262 = vrot.lane.b32.xlu0 %v1247, 96
  %v1263 = vpop.permute.xlu0 %1262
  %s1265 = scalar_lea.vmem %s8, 8
  %1266 = vst.msk [vmem:[%s1265] sm:$0xff] %vm77, %v1263
  // Predicated region
  $region30: #{encoder_forward.1} parent=0 // pred_check
    _
  $region31: #{encoder_forward.1} parent=0 // pred_check_branch
    %1268 = sbr.rel (0) target = $region33
  $region32: #{encoder_forward.1} parent=0 // pred_region
    _
  $region33: #{encoder_forward.1} parent=0 // pred_fallthru
    _
  // Predicated region
  $region34: #{encoder_forward.1} parent=0 // pred_check
    _
  $region35: #{encoder_forward.1} parent=0 // pred_check_branch
    %1270 = sbr.rel (0) target = $region37
  $region36: #{encoder_forward.1} parent=0 // pred_region
    _
  $region37: #{encoder_forward.1} parent=0 // pred_fallthru
    _
  // Predicated region
  $region38: #{encoder_forward.1} parent=0 // pred_check
    _
  $region39: #{encoder_forward.1} parent=0 // pred_check_branch
    %1272 = sbr.rel (0) target = $region41
  $region40: #{encoder_forward.1} parent=0 // pred_region
    _
  $region41: #{encoder_forward.1} parent=0 // pred_fallthru
    _
  // Predicated region
  $region42: #{encoder_forward.1} parent=0 // pred_check
    _
  $region43: #{encoder_forward.1} parent=0 // pred_check_branch
    %1274 = sbr.rel (0) target = $region45
  $region44: #{encoder_forward.1} parent=0 // pred_region
    _
  $region45: #{encoder_forward.1} parent=0 // pred_fallthru
    _

</llo_original>
